<compile_context>
chip_gen: v5e
topology: v5e:2x2
jax: 0.10.0
libtpu: 0.0.40
codegen_flags: <defaults>
</compile_context>

<pallas_src>
import math

import jax
import jax.numpy as jnp
from jax import lax
from jax.experimental import pallas as pl
from jax.experimental.pallas import tpu as pltpu

LN_EPS = 1e-12
PAD_MASK = -1e9  # additive mask for padded entity keys


def _layer_norm(x, gamma, beta):
    mean = jnp.mean(x, axis=-1, keepdims=True)
    var = jnp.mean(jnp.square(x - mean), axis=-1, keepdims=True)
    return (x - mean) * lax.rsqrt(var + LN_EPS) * gamma + beta


def pack_params(layer_params, num_heads):
    """Pack per-layer nn.Linear / LayerNorm params into 2 stacked slabs.

    Per layer:
      w_a [H+6, 7H+I]:
        rows 0..H-1 : [wq' | ww2e' | we2w' | we2e' | wk | wv | wo_attn | w_ffn_in]
        row  H      : matching biases
        row  H+1    : b_ffn_out (first H cols)
        rows H+2..H+5: ln1_gamma, ln1_beta, ln2_gamma, ln2_beta (first H cols)
      w_b [I, H]   : w_ffn_out
    The ' entries have 1/sqrt(head_dim) folded in (no in-kernel score scaling).
    """
    H = layer_params[0]["wq"].shape[0]
    I = layer_params[0]["wi"].shape[1]
    inv_scale = 1.0 / math.sqrt(H // num_heads)
    w_a, w_b = [], []
    for p in layer_params:
        w_row = jnp.concatenate(
            [p["wq"] * inv_scale, p["ww2e"] * inv_scale,
             p["we2w"] * inv_scale, p["we2e"] * inv_scale,
             p["wk"], p["wv"], p["wo"], p["wi"]], axis=1)               # [H, 7H+I]
        b_row = jnp.concatenate(
            [p["bq"] * inv_scale, p["bw2e"] * inv_scale,
             p["be2w"] * inv_scale, p["be2e"] * inv_scale,
             p["bk"], p["bv"], p["bo"], p["bi"]], axis=1)               # [1, 7H+I]
        vec = jnp.concatenate(
            [p["bo2"], p["g1"], p["b1"], p["g2"], p["b2"]], axis=0)     # [5, H]
        vec = jnp.pad(vec, ((0, 0), (0, 6 * H + I)))                    # [5, 7H+I]
        w_a.append(jnp.concatenate([w_row, b_row, vec], axis=0))        # [H+6, 7H+I]
        w_b.append(p["wo2"])
    return {"w_a": jnp.stack(w_a), "w_b": jnp.stack(w_b)}


def entity_aware_encoder(word, ent, mask, packed, *, num_heads):
    """word [B,W,H], ent [B,E,H], mask [B,1,W+E] additive; packed = pack_params()."""
    B, W, H = word.shape
    E = ent.shape[1]
    T_real = W + E
    T = ((T_real + 7) // 8) * 8          # pad seq so [B*T,H] <-> [B,T,H] is free
    pad = T - T_real
    L = packed["w_a"].shape[0]
    I = packed["w_b"].shape[1]
    assert H % num_heads == 0, "hidden size must be divisible by num_heads"
    assert packed["w_a"].shape[1:] == (H + 6, 7 * H + I), "slab layout mismatch"
    NH, HD = num_heads, H // num_heads

    # Single concatenated (and padded) input; padded keys are hard-masked.
    if pad:
        x0 = jnp.concatenate(
            [word, ent, jnp.zeros((B, pad, H), word.dtype)], axis=1)
        mask_p = jnp.concatenate(
            [mask, jnp.full((B, 1, pad), PAD_MASK, mask.dtype)], axis=2)
    else:
        x0 = jnp.concatenate([word, ent], axis=1)
        mask_p = mask

    def kernel(x0_ref, mask_ref, wa_ref, wb_ref, out_ref):
        # Output block is grid-resident (constant block index every layer) and
        # doubles as the carried hidden state [B, T, H]; seed once at layer 0.
        @pl.when(pl.program_id(0) == 0)
        def _seed():
            out_ref[...] = x0_ref[...]

        # Per-layer parameter slab (double-buffered by the pipeline).
        w_qkv = wa_ref[0, :H, :6 * H]                 # [H, 6H]
        b_qkv = wa_ref[0, H:H + 1, :6 * H]            # [1, 6H]
        w_attn_out = wa_ref[0, :H, 6 * H:7 * H]       # [H, H]
        b_attn_out = wa_ref[0, H:H + 1, 6 * H:7 * H]  # [1, H]
        w_ffn_in = wa_ref[0, :H, 7 * H:]              # [H, I]
        b_ffn_in = wa_ref[0, H:H + 1, 7 * H:]         # [1, I]
        b_ffn_out = wa_ref[0, H + 1:H + 2, :H]        # [1, H]
        g1 = wa_ref[0, H + 2:H + 3, :H]
        bt1 = wa_ref[0, H + 3:H + 4, :H]
        g2 = wa_ref[0, H + 4:H + 5, :H]
        bt2 = wa_ref[0, H + 5:H + 6, :H]
        w_ffn_out = wb_ref[0]                         # [I, H]

        x = out_ref[...].reshape(B * T, H)            # whole batch, [B*T, H]
        amask = mask_ref[...]                         # [B, 1, T] additive key mask

        # Row selector (word rows vs entity rows) and key selector, per layer.
        row_is_word = (lax.broadcasted_iota(jnp.int32, (B * T, H), 0) % T) < W
        key_is_word = lax.broadcasted_iota(jnp.int32, (1, T, T), 2) < W

        # Fused lane-dense projection for the whole batch:
        # q_w2w | q_w2e | q_e2w | q_e2e | k | v in one matmul.
        proj = jnp.dot(x, w_qkv, preferred_element_type=jnp.float32) + b_qkv
        qa = jnp.where(row_is_word, proj[:, 0:H], proj[:, 2 * H:3 * H])
        qb = jnp.where(row_is_word, proj[:, H:2 * H], proj[:, 3 * H:4 * H])
        qa = qa.reshape(B, T, H)
        qb = qb.reshape(B, T, H)
        k = proj[:, 4 * H:5 * H].reshape(B, T, H)
        v = proj[:, 5 * H:6 * H].reshape(B, T, H)

        # BertSelfOutput accumulator: residual + bias, then per-head
        # matmul-accumulate (no head concatenation).
        acc = x + b_attn_out
        dn_s = (((2,), (2,)), ((0,), (0,)))    # [B,T,HD] x [B,T,HD] -> [B,T,T]
        dn_pv = (((2,), (1,)), ((0,), (0,)))   # [B,T,T] x [B,T,HD] -> [B,T,HD]
        for h in range(NH):                    # static unroll over heads
            sl = slice(h * HD, (h + 1) * HD)
            kh = k[:, :, sl]
            s_a = lax.dot_general(qa[:, :, sl], kh, dn_s,
                                  preferred_element_type=jnp.float32)
            s_b = lax.dot_general(qb[:, :, sl], kh, dn_s,
                                  preferred_element_type=jnp.float32)
            # word keys use the *-to-word query, entity keys the *-to-entity one.
            s = jnp.where(key_is_word, s_a, s_b) + amask
            s = s - jnp.max(s, axis=-1, keepdims=True)
            p = jnp.exp(s)
            denom = jnp.sum(p, axis=-1, keepdims=True)
            r = pl.reciprocal(denom, approx=True)
            r = r * (2.0 - denom * r)          # one Newton step -> full precision
            ctx_h = lax.dot_general(p, v[:, :, sl], dn_pv,
                                    preferred_element_type=jnp.float32)
            ctx_h = (ctx_h * r).reshape(B * T, HD)
            acc = acc + jnp.dot(ctx_h, w_attn_out[sl, :],
                                preferred_element_type=jnp.float32)

        attn = _layer_norm(acc, g1, bt1)
        # BertIntermediate (GELU) + BertOutput (dense + residual + LayerNorm).
        inter = jax.nn.gelu(
            jnp.dot(attn, w_ffn_in, preferred_element_type=jnp.float32) + b_ffn_in,
            approximate=True)
        y = jnp.dot(inter, w_ffn_out, preferred_element_type=jnp.float32)
        out = _layer_norm(y + b_ffn_out + attn, g2, bt2)
        out_ref[...] = out.reshape(B, T, H).astype(out_ref.dtype)

    out = pl.pallas_call(
        kernel,
        out_shape=jax.ShapeDtypeStruct((B, T, H), word.dtype),
        grid=(L,),
        in_specs=[
            pl.BlockSpec((B, T, H), lambda l: (0, 0, 0)),
            pl.BlockSpec((B, 1, T), lambda l: (0, 0, 0)),
            pl.BlockSpec((1, H + 6, 7 * H + I), lambda l: (l, 0, 0)),
            pl.BlockSpec((1, I, H), lambda l: (l, 0, 0)),
        ],
        out_specs=pl.BlockSpec((B, T, H), lambda l: (0, 0, 0)),
        compiler_params=pltpu.CompilerParams(dimension_semantics=("arbitrary",)),
    )(x0, mask_p, packed["w_a"], packed["w_b"])
    return out[:, :W, :], out[:, W:W + E, :]


# ----------------------------- pure-JAX reference -----------------------------
def _layer_reference(word, ent, mask, p, num_heads):
    B, W, H = word.shape
    NH, HD = num_heads, H // num_heads

    def lin(x, w, b):
        return x @ w + b

    def heads(x):
        return x.reshape(x.shape[0], x.shape[1], NH, HD).transpose(0, 2, 1, 3)

    def ln(x, g, b):
        m = x.mean(-1, keepdims=True)
        v = ((x - m) ** 2).mean(-1, keepdims=True)
        return (x - m) / jnp.sqrt(v + LN_EPS) * g + b

    allh = jnp.concatenate([word, ent], axis=1)
    k = heads(lin(allh, p["wk"], p["bk"]))
    v = heads(lin(allh, p["wv"], p["bv"]))
    q_w2w = heads(lin(word, p["wq"], p["bq"]))
    q_w2e = heads(lin(word, p["ww2e"], p["bw2e"]))
    q_e2w = heads(lin(ent, p["we2w"], p["be2w"]))
    q_e2e = heads(lin(ent, p["we2e"], p["be2e"]))
    kt_w = k[:, :, :W, :].transpose(0, 1, 3, 2)
    kt_e = k[:, :, W:, :].transpose(0, 1, 3, 2)
    s_w = jnp.concatenate([q_w2w @ kt_w, q_w2e @ kt_e], axis=-1)
    s_e = jnp.concatenate([q_e2w @ kt_w, q_e2e @ kt_e], axis=-1)
    s = jnp.concatenate([s_w, s_e], axis=2) / math.sqrt(HD) + mask[:, None, :, :]
    pr = jax.nn.softmax(s, axis=-1)
    ctx = (pr @ v).transpose(0, 2, 1, 3).reshape(B, allh.shape[1], H)
    a1 = ln(lin(ctx, p["wo"], p["bo"]) + allh, p["g1"], p["b1"])
    inter = jax.nn.gelu(lin(a1, p["wi"], p["bi"]), approximate=True)
    out = ln(lin(inter, p["wo2"], p["bo2"]) + a1, p["g2"], p["b2"])
    return out[:, :W, :], out[:, W:, :]


def encoder_reference(word, ent, mask, layer_params, num_heads):
    for p in layer_params:
        word, ent = _layer_reference(word, ent, mask, p, num_heads)
    return word, ent


if __name__ == "__main__":
    B, W, E = 2, 8, 4
    H, NH, I, L = 32, 4, 128, 2

    key = jax.random.PRNGKey(0)

    def make_layer(k):
        ks = jax.random.split(k, 22)
        w = lambda kk, i, o: jax.random.normal(kk, (i, o), jnp.float32) * 0.02
        b = lambda kk, o: jax.random.normal(kk, (1, o), jnp.float32) * 0.02
        return {
            "wq": w(ks[0], H, H), "bq": b(ks[1], H),
            "wk": w(ks[2], H, H), "bk": b(ks[3], H),
            "wv": w(ks[4], H, H), "bv": b(ks[5], H),
            "ww2e": w(ks[6], H, H), "bw2e": b(ks[7], H),
            "we2w": w(ks[8], H, H), "be2w": b(ks[9], H),
            "we2e": w(ks[10], H, H), "be2e": b(ks[11], H),
            "wo": w(ks[12], H, H), "bo": b(ks[13], H),
            "g1": 1.0 + b(ks[14], H), "b1": b(ks[15], H),
            "wi": w(ks[16], H, I), "bi": b(ks[17], I),
            "wo2": w(ks[18], I, H), "bo2": b(ks[19], H),
            "g2": 1.0 + b(ks[20], H), "b2": b(ks[21], H),
        }

    key, *layer_keys = jax.random.split(key, L + 1)
    layer_params = [make_layer(k) for k in layer_keys]

    key, kw, ke = jax.random.split(key, 3)
    word = jax.random.normal(kw, (B, W, H), jnp.float32)
    ent = jax.random.normal(ke, (B, E, H), jnp.float32)
    # Additive attention mask: 0 = attend, -10000 = masked; mask the last
    # entity key of batch 1 so the mask path is exercised.
    mask = jnp.zeros((B, 1, W + E), jnp.float32).at[1, 0, -1].set(-10000.0)

    packed = pack_params(layer_params, NH)
    word_out, ent_out = entity_aware_encoder(word, ent, mask, packed, num_heads=NH)
    jax.block_until_ready((word_out, ent_out))

    ref_w, ref_e = encoder_reference(word, ent, mask, layer_params, NH)
    assert word_out.shape == (B, W, H) and ent_out.shape == (B, E, H)
    assert jnp.allclose(word_out, ref_w, atol=2e-4, rtol=2e-4), \
        float(jnp.max(jnp.abs(word_out - ref_w)))
    assert jnp.allclose(ent_out, ref_e, atol=2e-4, rtol=2e-4), \
        float(jnp.max(jnp.abs(ent_out - ref_e)))
    print("KERNEL_OK")
</pallas_src>

<mosaic_0001>
module attributes {stable_mosaic.version = 11 : i64} {
  func.func @kernel(%arg0: i32, %arg1: memref<2x16x32xf32, #tpu.memory_space<vmem>>, %arg2: memref<2x1x16xf32, #tpu.memory_space<vmem>>, %arg3: memref<1x38x352xf32, #tpu.memory_space<vmem>>, %arg4: memref<1x128x32xf32, #tpu.memory_space<vmem>>, %arg5: memref<2x16x32xf32, #tpu.memory_space<vmem>>) attributes {dimension_semantics = [#tpu.dimension_semantics<arbitrary>], iteration_bounds = array<i64: 2>, scalar_prefetch = 0 : i64, scratch_operands = 0 : i64, tpu.core_type = #tpu.core_type<tc>, window_params = [{pipeline_mode = #tpu.pipeline_mode<synchronous>, transform_indices = @transform_0, window_bounds = array<i64: 2, 16, 32>}, {pipeline_mode = #tpu.pipeline_mode<synchronous>, transform_indices = @transform_1, window_bounds = array<i64: 2, 1, 16>}, {transform_indices = @transform_2, window_bounds = array<i64: 1, 38, 352>}, {transform_indices = @transform_3, window_bounds = array<i64: 1, 128, 32>}, {pipeline_mode = #tpu.pipeline_mode<synchronous>, transform_indices = @transform_4, window_bounds = array<i64: 2, 16, 32>}]} {
    %c0_i32 = arith.constant 0 : i32
    %0 = arith.cmpi eq, %arg0, %c0_i32 : i32
    %1 = arith.extui %0 : i1 to i32
    %c0_i32_0 = arith.constant 0 : i32
    %2 = arith.cmpi ne, %1, %c0_i32_0 : i32
    scf.if %2 {
      %c0_86 = arith.constant 0 : index
      %c0_87 = arith.constant 0 : index
      %c0_88 = arith.constant 0 : index
      %255 = vector.load %arg1[%c0_86, %c0_87, %c0_88] : memref<2x16x32xf32, #tpu.memory_space<vmem>>, vector<2x16x32xf32>
      %c0_89 = arith.constant 0 : index
      %c0_90 = arith.constant 0 : index
      %c0_91 = arith.constant 0 : index
      %256 = vector.load %arg5[%c0_89, %c0_90, %c0_91] : memref<2x16x32xf32, #tpu.memory_space<vmem>>, vector<2x16x32xf32>
      tpu.vector_store %arg5[%c0_89, %c0_90, %c0_91], %255 {strides = array<i32>} : memref<2x16x32xf32, #tpu.memory_space<vmem>>, vector<2x16x32xf32>,
    } else {
    }
    %c0 = arith.constant 0 : index
    %c0_1 = arith.constant 0 : index
    %c0_2 = arith.constant 0 : index
    %3 = vector.load %arg3[%c0, %c0_1, %c0_2] : memref<1x38x352xf32, #tpu.memory_space<vmem>>, vector<1x32x192xf32>
    %4 = vector.shape_cast %3 : vector<1x32x192xf32> to vector<32x192xf32>
    %c0_3 = arith.constant 0 : index
    %c32 = arith.constant 32 : index
    %c0_4 = arith.constant 0 : index
    %5 = vector.load %arg3[%c0_3, %c32, %c0_4] : memref<1x38x352xf32, #tpu.memory_space<vmem>>, vector<1x1x192xf32>
    %6 = vector.shape_cast %5 : vector<1x1x192xf32> to vector<1x192xf32>
    %c0_5 = arith.constant 0 : index
    %c0_6 = arith.constant 0 : index
    %c192 = arith.constant 192 : index
    %7 = vector.load %arg3[%c0_5, %c0_6, %c192] : memref<1x38x352xf32, #tpu.memory_space<vmem>>, vector<1x32x32xf32>
    %8 = vector.shape_cast %7 : vector<1x32x32xf32> to vector<32x32xf32>
    %c0_7 = arith.constant 0 : index
    %c32_8 = arith.constant 32 : index
    %c192_9 = arith.constant 192 : index
    %9 = vector.load %arg3[%c0_7, %c32_8, %c192_9] : memref<1x38x352xf32, #tpu.memory_space<vmem>>, vector<1x1x32xf32>
    %10 = vector.shape_cast %9 : vector<1x1x32xf32> to vector<1x32xf32>
    %c0_10 = arith.constant 0 : index
    %c0_11 = arith.constant 0 : index
    %c224 = arith.constant 224 : index
    %11 = vector.load %arg3[%c0_10, %c0_11, %c224] : memref<1x38x352xf32, #tpu.memory_space<vmem>>, vector<1x32x128xf32>
    %12 = vector.shape_cast %11 : vector<1x32x128xf32> to vector<32x128xf32>
    %c0_12 = arith.constant 0 : index
    %c32_13 = arith.constant 32 : index
    %c224_14 = arith.constant 224 : index
    %13 = vector.load %arg3[%c0_12, %c32_13, %c224_14] : memref<1x38x352xf32, #tpu.memory_space<vmem>>, vector<1x1x128xf32>
    %14 = vector.shape_cast %13 : vector<1x1x128xf32> to vector<1x128xf32>
    %c0_15 = arith.constant 0 : index
    %c33 = arith.constant 33 : index
    %c0_16 = arith.constant 0 : index
    %15 = vector.load %arg3[%c0_15, %c33, %c0_16] : memref<1x38x352xf32, #tpu.memory_space<vmem>>, vector<1x1x32xf32>
    %16 = vector.shape_cast %15 : vector<1x1x32xf32> to vector<1x32xf32>
    %c0_17 = arith.constant 0 : index
    %c34 = arith.constant 34 : index
    %c0_18 = arith.constant 0 : index
    %17 = vector.load %arg3[%c0_17, %c34, %c0_18] : memref<1x38x352xf32, #tpu.memory_space<vmem>>, vector<1x1x32xf32>
    %18 = vector.shape_cast %17 : vector<1x1x32xf32> to vector<1x32xf32>
    %c0_19 = arith.constant 0 : index
    %c35 = arith.constant 35 : index
    %c0_20 = arith.constant 0 : index
    %19 = vector.load %arg3[%c0_19, %c35, %c0_20] : memref<1x38x352xf32, #tpu.memory_space<vmem>>, vector<1x1x32xf32>
    %20 = vector.shape_cast %19 : vector<1x1x32xf32> to vector<1x32xf32>
    %c0_21 = arith.constant 0 : index
    %c36 = arith.constant 36 : index
    %c0_22 = arith.constant 0 : index
    %21 = vector.load %arg3[%c0_21, %c36, %c0_22] : memref<1x38x352xf32, #tpu.memory_space<vmem>>, vector<1x1x32xf32>
    %22 = vector.shape_cast %21 : vector<1x1x32xf32> to vector<1x32xf32>
    %c0_23 = arith.constant 0 : index
    %c37 = arith.constant 37 : index
    %c0_24 = arith.constant 0 : index
    %23 = vector.load %arg3[%c0_23, %c37, %c0_24] : memref<1x38x352xf32, #tpu.memory_space<vmem>>, vector<1x1x32xf32>
    %24 = vector.shape_cast %23 : vector<1x1x32xf32> to vector<1x32xf32>
    %c0_25 = arith.constant 0 : index
    %c0_26 = arith.constant 0 : index
    %c0_27 = arith.constant 0 : index
    %25 = vector.load %arg4[%c0_25, %c0_26, %c0_27] : memref<1x128x32xf32, #tpu.memory_space<vmem>>, vector<1x128x32xf32>
    %26 = vector.shape_cast %25 : vector<1x128x32xf32> to vector<128x32xf32>
    %c0_28 = arith.constant 0 : index
    %c0_29 = arith.constant 0 : index
    %c0_30 = arith.constant 0 : index
    %27 = vector.load %arg5[%c0_28, %c0_29, %c0_30] : memref<2x16x32xf32, #tpu.memory_space<vmem>>, vector<2x16x32xf32>
    %28 = vector.shape_cast %27 : vector<2x16x32xf32> to vector<32x32xf32>
    %c0_31 = arith.constant 0 : index
    %c0_32 = arith.constant 0 : index
    %c0_33 = arith.constant 0 : index
    %29 = vector.load %arg2[%c0_31, %c0_32, %c0_33] : memref<2x1x16xf32, #tpu.memory_space<vmem>>, vector<2x1x16xf32>
    %30 = tpu.iota {dimensions = array<i32: 0>} : vector<32x32xi32>
    %c16_i32 = arith.constant 16 : i32
    %c0_i32_34 = arith.constant 0 : i32
    %31 = arith.cmpi eq, %c16_i32, %c0_i32_34 : i32
    %c1_i32 = arith.constant 1 : i32
    %32 = arith.select %31, %c1_i32, %c16_i32 : i32
    %33 = vector.broadcast %32 : i32 to vector<32x32xi32>
    %34 = arith.remsi %30, %33 : vector<32x32xi32>
    %c0_i32_35 = arith.constant 0 : i32
    %35 = vector.broadcast %c0_i32_35 : i32 to vector<32x32xi32>
    %36 = arith.cmpi ne, %34, %35 : vector<32x32xi32>
    %c0_i32_36 = arith.constant 0 : i32
    %37 = vector.broadcast %c0_i32_36 : i32 to vector<32x32xi32>
    %38 = arith.cmpi slt, %34, %37 : vector<32x32xi32>
    %c0_i32_37 = arith.constant 0 : i32
    %39 = arith.cmpi slt, %32, %c0_i32_37 : i32
    %40 = vector.broadcast %39 : i1 to vector<32x32xi1>
    %41 = vector.broadcast %40 : vector<32x32xi1> to vector<32x32xi1>
    %42 = arith.xori %38, %41 : vector<32x32xi1>
    %43 = arith.andi %42, %36 : vector<32x32xi1>
    %44 = vector.broadcast %32 : i32 to vector<32x32xi32>
    %45 = arith.addi %34, %44 : vector<32x32xi32>
    %46 = arith.select %43, %45, %34 : vector<32x32xi1>, vector<32x32xi32>
    %c8_i32 = arith.constant 8 : i32
    %47 = vector.broadcast %c8_i32 : i32 to vector<32x32xi32>
    %48 = arith.cmpi slt, %46, %47 : vector<32x32xi32>
    %49 = tpu.iota {dimensions = array<i32: 2>} : vector<1x16x16xi32>
    %c8_i32_38 = arith.constant 8 : i32
    %50 = vector.broadcast %c8_i32_38 : i32 to vector<1x16x16xi32>
    %51 = arith.cmpi slt, %49, %50 : vector<1x16x16xi32>
    %cst = arith.constant dense<0.000000e+00> : vector<32x192xf32>
    %52 = tpu.matmul %28, %4, %cst {dimension_numbers = #tpu.dot_dimension_numbers<[1], [0], [0], [1], [0, 0, 1, 1], [], []>} : vector<32x32xf32>, vector<32x192xf32>, vector<32x192xf32> -> vector<32x192xf32>
    %53 = vector.broadcast %6 : vector<1x192xf32> to vector<32x192xf32>
    %54 = arith.addf %52, %53 : vector<32x192xf32>
    %55 = vector.extract_strided_slice %54 {offsets = [0, 0], sizes = [32, 32], strides = [1, 1]} : vector<32x192xf32> to vector<32x32xf32>
    %56 = vector.extract_strided_slice %54 {offsets = [0, 64], sizes = [32, 32], strides = [1, 1]} : vector<32x192xf32> to vector<32x32xf32>
    %57 = arith.select %48, %55, %56 : vector<32x32xi1>, vector<32x32xf32>
    %58 = vector.extract_strided_slice %54 {offsets = [0, 32], sizes = [32, 32], strides = [1, 1]} : vector<32x192xf32> to vector<32x32xf32>
    %59 = vector.extract_strided_slice %54 {offsets = [0, 96], sizes = [32, 32], strides = [1, 1]} : vector<32x192xf32> to vector<32x32xf32>
    %60 = arith.select %48, %58, %59 : vector<32x32xi1>, vector<32x32xf32>
    %61 = vector.shape_cast %57 : vector<32x32xf32> to vector<2x16x32xf32>
    %62 = vector.shape_cast %60 : vector<32x32xf32> to vector<2x16x32xf32>
    %63 = vector.extract_strided_slice %54 {offsets = [0, 128], sizes = [32, 32], strides = [1, 1]} : vector<32x192xf32> to vector<32x32xf32>
    %64 = vector.shape_cast %63 : vector<32x32xf32> to vector<2x16x32xf32>
    %65 = vector.extract_strided_slice %54 {offsets = [0, 160], sizes = [32, 32], strides = [1, 1]} : vector<32x192xf32> to vector<32x32xf32>
    %66 = vector.shape_cast %65 : vector<32x32xf32> to vector<2x16x32xf32>
    %67 = vector.broadcast %10 : vector<1x32xf32> to vector<32x32xf32>
    %68 = arith.addf %28, %67 : vector<32x32xf32>
    %69 = vector.extract_strided_slice %64 {offsets = [0, 0, 0], sizes = [2, 16, 8], strides = [1, 1, 1]} : vector<2x16x32xf32> to vector<2x16x8xf32>
    %70 = vector.extract_strided_slice %61 {offsets = [0, 0, 0], sizes = [2, 16, 8], strides = [1, 1, 1]} : vector<2x16x32xf32> to vector<2x16x8xf32>
    %cst_39 = arith.constant dense<0.000000e+00> : vector<2x16x16xf32>
    %71 = tpu.matmul %70, %69, %cst_39 {dimension_numbers = #tpu.dot_dimension_numbers<[2], [2], [1], [1], [0, 0, 0, 1, 1, 1], [0], [0]>} : vector<2x16x8xf32>, vector<2x16x8xf32>, vector<2x16x16xf32> -> vector<2x16x16xf32>
    %72 = vector.extract_strided_slice %62 {offsets = [0, 0, 0], sizes = [2, 16, 8], strides = [1, 1, 1]} : vector<2x16x32xf32> to vector<2x16x8xf32>
    %cst_40 = arith.constant dense<0.000000e+00> : vector<2x16x16xf32>
    %73 = tpu.matmul %72, %69, %cst_40 {dimension_numbers = #tpu.dot_dimension_numbers<[2], [2], [1], [1], [0, 0, 0, 1, 1, 1], [0], [0]>} : vector<2x16x8xf32>, vector<2x16x8xf32>, vector<2x16x16xf32> -> vector<2x16x16xf32>
    %74 = vector.shape_cast %51 : vector<1x16x16xi1> to vector<1x16x16xi1>
    %75 = vector.broadcast %74 : vector<1x16x16xi1> to vector<2x16x16xi1>
    %76 = arith.select %75, %71, %73 : vector<2x16x16xi1>, vector<2x16x16xf32>
    %77 = vector.broadcast %29 : vector<2x1x16xf32> to vector<2x16x16xf32>
    %78 = arith.addf %76, %77 : vector<2x16x16xf32>
    %cst_41 = arith.constant dense<0xFF800000> : vector<2x16xf32>
    %79 = vector.multi_reduction <maximumf>, %78, %cst_41 [2] : vector<2x16x16xf32> to vector<2x16xf32>
    %80 = vector.shape_cast %79 : vector<2x16xf32> to vector<2x16x1xf32>
    %81 = vector.broadcast %80 : vector<2x16x1xf32> to vector<2x16x16xf32>
    %82 = arith.subf %78, %81 : vector<2x16x16xf32>
    %83 = math.exp %82 : vector<2x16x16xf32>
    %cst_42 = arith.constant dense<0.000000e+00> : vector<2x16xf32>
    %84 = vector.multi_reduction <add>, %83, %cst_42 [2] : vector<2x16x16xf32> to vector<2x16xf32>
    %85 = vector.shape_cast %84 : vector<2x16xf32> to vector<2x16x1xf32>
    %86 = tpu.reciprocal %85 {approx = true} : vector<2x16x1xf32> -> vector<2x16x1xf32>
    %87 = arith.mulf %85, %86 : vector<2x16x1xf32>
    %cst_43 = arith.constant 2.000000e+00 : f32
    %88 = vector.broadcast %cst_43 : f32 to vector<2x16x1xf32>
    %89 = arith.subf %88, %87 : vector<2x16x1xf32>
    %90 = arith.mulf %86, %89 : vector<2x16x1xf32>
    %91 = vector.extract_strided_slice %66 {offsets = [0, 0, 0], sizes = [2, 16, 8], strides = [1, 1, 1]} : vector<2x16x32xf32> to vector<2x16x8xf32>
    %cst_44 = arith.constant dense<0.000000e+00> : vector<2x16x8xf32>
    %92 = tpu.matmul %83, %91, %cst_44 {dimension_numbers = #tpu.dot_dimension_numbers<[2], [1], [1], [2], [0, 0, 0, 1, 1, 2], [0], [0]>} : vector<2x16x16xf32>, vector<2x16x8xf32>, vector<2x16x8xf32> -> vector<2x16x8xf32>
    %93 = vector.broadcast %90 : vector<2x16x1xf32> to vector<2x16x8xf32>
    %94 = arith.mulf %92, %93 : vector<2x16x8xf32>
    %95 = vector.shape_cast %94 : vector<2x16x8xf32> to vector<32x8xf32>
    %96 = vector.extract_strided_slice %8 {offsets = [0, 0], sizes = [8, 32], strides = [1, 1]} : vector<32x32xf32> to vector<8x32xf32>
    %cst_45 = arith.constant dense<0.000000e+00> : vector<32x32xf32>
    %97 = tpu.matmul %95, %96, %cst_45 {dimension_numbers = #tpu.dot_dimension_numbers<[1], [0], [0], [1], [0, 0, 1, 1], [], []>} : vector<32x8xf32>, vector<8x32xf32>, vector<32x32xf32> -> vector<32x32xf32>
    %98 = arith.addf %68, %97 : vector<32x32xf32>
    %99 = vector.extract_strided_slice %64 {offsets = [0, 0, 8], sizes = [2, 16, 8], strides = [1, 1, 1]} : vector<2x16x32xf32> to vector<2x16x8xf32>
    %100 = vector.extract_strided_slice %61 {offsets = [0, 0, 8], sizes = [2, 16, 8], strides = [1, 1, 1]} : vector<2x16x32xf32> to vector<2x16x8xf32>
    %cst_46 = arith.constant dense<0.000000e+00> : vector<2x16x16xf32>
    %101 = tpu.matmul %100, %99, %cst_46 {dimension_numbers = #tpu.dot_dimension_numbers<[2], [2], [1], [1], [0, 0, 0, 1, 1, 1], [0], [0]>} : vector<2x16x8xf32>, vector<2x16x8xf32>, vector<2x16x16xf32> -> vector<2x16x16xf32>
    %102 = vector.extract_strided_slice %62 {offsets = [0, 0, 8], sizes = [2, 16, 8], strides = [1, 1, 1]} : vector<2x16x32xf32> to vector<2x16x8xf32>
    %cst_47 = arith.constant dense<0.000000e+00> : vector<2x16x16xf32>
    %103 = tpu.matmul %102, %99, %cst_47 {dimension_numbers = #tpu.dot_dimension_numbers<[2], [2], [1], [1], [0, 0, 0, 1, 1, 1], [0], [0]>} : vector<2x16x8xf32>, vector<2x16x8xf32>, vector<2x16x16xf32> -> vector<2x16x16xf32>
    %104 = vector.shape_cast %51 : vector<1x16x16xi1> to vector<1x16x16xi1>
    %105 = vector.broadcast %104 : vector<1x16x16xi1> to vector<2x16x16xi1>
    %106 = arith.select %105, %101, %103 : vector<2x16x16xi1>, vector<2x16x16xf32>
    %107 = vector.broadcast %29 : vector<2x1x16xf32> to vector<2x16x16xf32>
    %108 = arith.addf %106, %107 : vector<2x16x16xf32>
    %cst_48 = arith.constant dense<0xFF800000> : vector<2x16xf32>
    %109 = vector.multi_reduction <maximumf>, %108, %cst_48 [2] : vector<2x16x16xf32> to vector<2x16xf32>
    %110 = vector.shape_cast %109 : vector<2x16xf32> to vector<2x16x1xf32>
    %111 = vector.broadcast %110 : vector<2x16x1xf32> to vector<2x16x16xf32>
    %112 = arith.subf %108, %111 : vector<2x16x16xf32>
    %113 = math.exp %112 : vector<2x16x16xf32>
    %cst_49 = arith.constant dense<0.000000e+00> : vector<2x16xf32>
    %114 = vector.multi_reduction <add>, %113, %cst_49 [2] : vector<2x16x16xf32> to vector<2x16xf32>
    %115 = vector.shape_cast %114 : vector<2x16xf32> to vector<2x16x1xf32>
    %116 = tpu.reciprocal %115 {approx = true} : vector<2x16x1xf32> -> vector<2x16x1xf32>
    %117 = arith.mulf %115, %116 : vector<2x16x1xf32>
    %cst_50 = arith.constant 2.000000e+00 : f32
    %118 = vector.broadcast %cst_50 : f32 to vector<2x16x1xf32>
    %119 = arith.subf %118, %117 : vector<2x16x1xf32>
    %120 = arith.mulf %116, %119 : vector<2x16x1xf32>
    %121 = vector.extract_strided_slice %66 {offsets = [0, 0, 8], sizes = [2, 16, 8], strides = [1, 1, 1]} : vector<2x16x32xf32> to vector<2x16x8xf32>
    %cst_51 = arith.constant dense<0.000000e+00> : vector<2x16x8xf32>
    %122 = tpu.matmul %113, %121, %cst_51 {dimension_numbers = #tpu.dot_dimension_numbers<[2], [1], [1], [2], [0, 0, 0, 1, 1, 2], [0], [0]>} : vector<2x16x16xf32>, vector<2x16x8xf32>, vector<2x16x8xf32> -> vector<2x16x8xf32>
    %123 = vector.broadcast %120 : vector<2x16x1xf32> to vector<2x16x8xf32>
    %124 = arith.mulf %122, %123 : vector<2x16x8xf32>
    %125 = vector.shape_cast %124 : vector<2x16x8xf32> to vector<32x8xf32>
    %126 = vector.extract_strided_slice %8 {offsets = [8, 0], sizes = [8, 32], strides = [1, 1]} : vector<32x32xf32> to vector<8x32xf32>
    %cst_52 = arith.constant dense<0.000000e+00> : vector<32x32xf32>
    %127 = tpu.matmul %125, %126, %cst_52 {dimension_numbers = #tpu.dot_dimension_numbers<[1], [0], [0], [1], [0, 0, 1, 1], [], []>} : vector<32x8xf32>, vector<8x32xf32>, vector<32x32xf32> -> vector<32x32xf32>
    %128 = arith.addf %98, %127 : vector<32x32xf32>
    %129 = vector.extract_strided_slice %64 {offsets = [0, 0, 16], sizes = [2, 16, 8], strides = [1, 1, 1]} : vector<2x16x32xf32> to vector<2x16x8xf32>
    %130 = vector.extract_strided_slice %61 {offsets = [0, 0, 16], sizes = [2, 16, 8], strides = [1, 1, 1]} : vector<2x16x32xf32> to vector<2x16x8xf32>
    %cst_53 = arith.constant dense<0.000000e+00> : vector<2x16x16xf32>
    %131 = tpu.matmul %130, %129, %cst_53 {dimension_numbers = #tpu.dot_dimension_numbers<[2], [2], [1], [1], [0, 0, 0, 1, 1, 1], [0], [0]>} : vector<2x16x8xf32>, vector<2x16x8xf32>, vector<2x16x16xf32> -> vector<2x16x16xf32>
    %132 = vector.extract_strided_slice %62 {offsets = [0, 0, 16], sizes = [2, 16, 8], strides = [1, 1, 1]} : vector<2x16x32xf32> to vector<2x16x8xf32>
    %cst_54 = arith.constant dense<0.000000e+00> : vector<2x16x16xf32>
    %133 = tpu.matmul %132, %129, %cst_54 {dimension_numbers = #tpu.dot_dimension_numbers<[2], [2], [1], [1], [0, 0, 0, 1, 1, 1], [0], [0]>} : vector<2x16x8xf32>, vector<2x16x8xf32>, vector<2x16x16xf32> -> vector<2x16x16xf32>
    %134 = vector.shape_cast %51 : vector<1x16x16xi1> to vector<1x16x16xi1>
    %135 = vector.broadcast %134 : vector<1x16x16xi1> to vector<2x16x16xi1>
    %136 = arith.select %135, %131, %133 : vector<2x16x16xi1>, vector<2x16x16xf32>
    %137 = vector.broadcast %29 : vector<2x1x16xf32> to vector<2x16x16xf32>
    %138 = arith.addf %136, %137 : vector<2x16x16xf32>
    %cst_55 = arith.constant dense<0xFF800000> : vector<2x16xf32>
    %139 = vector.multi_reduction <maximumf>, %138, %cst_55 [2] : vector<2x16x16xf32> to vector<2x16xf32>
    %140 = vector.shape_cast %139 : vector<2x16xf32> to vector<2x16x1xf32>
    %141 = vector.broadcast %140 : vector<2x16x1xf32> to vector<2x16x16xf32>
    %142 = arith.subf %138, %141 : vector<2x16x16xf32>
    %143 = math.exp %142 : vector<2x16x16xf32>
    %cst_56 = arith.constant dense<0.000000e+00> : vector<2x16xf32>
    %144 = vector.multi_reduction <add>, %143, %cst_56 [2] : vector<2x16x16xf32> to vector<2x16xf32>
    %145 = vector.shape_cast %144 : vector<2x16xf32> to vector<2x16x1xf32>
    %146 = tpu.reciprocal %145 {approx = true} : vector<2x16x1xf32> -> vector<2x16x1xf32>
    %147 = arith.mulf %145, %146 : vector<2x16x1xf32>
    %cst_57 = arith.constant 2.000000e+00 : f32
    %148 = vector.broadcast %cst_57 : f32 to vector<2x16x1xf32>
    %149 = arith.subf %148, %147 : vector<2x16x1xf32>
    %150 = arith.mulf %146, %149 : vector<2x16x1xf32>
    %151 = vector.extract_strided_slice %66 {offsets = [0, 0, 16], sizes = [2, 16, 8], strides = [1, 1, 1]} : vector<2x16x32xf32> to vector<2x16x8xf32>
    %cst_58 = arith.constant dense<0.000000e+00> : vector<2x16x8xf32>
    %152 = tpu.matmul %143, %151, %cst_58 {dimension_numbers = #tpu.dot_dimension_numbers<[2], [1], [1], [2], [0, 0, 0, 1, 1, 2], [0], [0]>} : vector<2x16x16xf32>, vector<2x16x8xf32>, vector<2x16x8xf32> -> vector<2x16x8xf32>
    %153 = vector.broadcast %150 : vector<2x16x1xf32> to vector<2x16x8xf32>
    %154 = arith.mulf %152, %153 : vector<2x16x8xf32>
    %155 = vector.shape_cast %154 : vector<2x16x8xf32> to vector<32x8xf32>
    %156 = vector.extract_strided_slice %8 {offsets = [16, 0], sizes = [8, 32], strides = [1, 1]} : vector<32x32xf32> to vector<8x32xf32>
    %cst_59 = arith.constant dense<0.000000e+00> : vector<32x32xf32>
    %157 = tpu.matmul %155, %156, %cst_59 {dimension_numbers = #tpu.dot_dimension_numbers<[1], [0], [0], [1], [0, 0, 1, 1], [], []>} : vector<32x8xf32>, vector<8x32xf32>, vector<32x32xf32> -> vector<32x32xf32>
    %158 = arith.addf %128, %157 : vector<32x32xf32>
    %159 = vector.extract_strided_slice %64 {offsets = [0, 0, 24], sizes = [2, 16, 8], strides = [1, 1, 1]} : vector<2x16x32xf32> to vector<2x16x8xf32>
    %160 = vector.extract_strided_slice %61 {offsets = [0, 0, 24], sizes = [2, 16, 8], strides = [1, 1, 1]} : vector<2x16x32xf32> to vector<2x16x8xf32>
    %cst_60 = arith.constant dense<0.000000e+00> : vector<2x16x16xf32>
    %161 = tpu.matmul %160, %159, %cst_60 {dimension_numbers = #tpu.dot_dimension_numbers<[2], [2], [1], [1], [0, 0, 0, 1, 1, 1], [0], [0]>} : vector<2x16x8xf32>, vector<2x16x8xf32>, vector<2x16x16xf32> -> vector<2x16x16xf32>
    %162 = vector.extract_strided_slice %62 {offsets = [0, 0, 24], sizes = [2, 16, 8], strides = [1, 1, 1]} : vector<2x16x32xf32> to vector<2x16x8xf32>
    %cst_61 = arith.constant dense<0.000000e+00> : vector<2x16x16xf32>
    %163 = tpu.matmul %162, %159, %cst_61 {dimension_numbers = #tpu.dot_dimension_numbers<[2], [2], [1], [1], [0, 0, 0, 1, 1, 1], [0], [0]>} : vector<2x16x8xf32>, vector<2x16x8xf32>, vector<2x16x16xf32> -> vector<2x16x16xf32>
    %164 = vector.shape_cast %51 : vector<1x16x16xi1> to vector<1x16x16xi1>
    %165 = vector.broadcast %164 : vector<1x16x16xi1> to vector<2x16x16xi1>
    %166 = arith.select %165, %161, %163 : vector<2x16x16xi1>, vector<2x16x16xf32>
    %167 = vector.broadcast %29 : vector<2x1x16xf32> to vector<2x16x16xf32>
    %168 = arith.addf %166, %167 : vector<2x16x16xf32>
    %cst_62 = arith.constant dense<0xFF800000> : vector<2x16xf32>
    %169 = vector.multi_reduction <maximumf>, %168, %cst_62 [2] : vector<2x16x16xf32> to vector<2x16xf32>
    %170 = vector.shape_cast %169 : vector<2x16xf32> to vector<2x16x1xf32>
    %171 = vector.broadcast %170 : vector<2x16x1xf32> to vector<2x16x16xf32>
    %172 = arith.subf %168, %171 : vector<2x16x16xf32>
    %173 = math.exp %172 : vector<2x16x16xf32>
    %cst_63 = arith.constant dense<0.000000e+00> : vector<2x16xf32>
    %174 = vector.multi_reduction <add>, %173, %cst_63 [2] : vector<2x16x16xf32> to vector<2x16xf32>
    %175 = vector.shape_cast %174 : vector<2x16xf32> to vector<2x16x1xf32>
    %176 = tpu.reciprocal %175 {approx = true} : vector<2x16x1xf32> -> vector<2x16x1xf32>
    %177 = arith.mulf %175, %176 : vector<2x16x1xf32>
    %cst_64 = arith.constant 2.000000e+00 : f32
    %178 = vector.broadcast %cst_64 : f32 to vector<2x16x1xf32>
    %179 = arith.subf %178, %177 : vector<2x16x1xf32>
    %180 = arith.mulf %176, %179 : vector<2x16x1xf32>
    %181 = vector.extract_strided_slice %66 {offsets = [0, 0, 24], sizes = [2, 16, 8], strides = [1, 1, 1]} : vector<2x16x32xf32> to vector<2x16x8xf32>
    %cst_65 = arith.constant dense<0.000000e+00> : vector<2x16x8xf32>
    %182 = tpu.matmul %173, %181, %cst_65 {dimension_numbers = #tpu.dot_dimension_numbers<[2], [1], [1], [2], [0, 0, 0, 1, 1, 2], [0], [0]>} : vector<2x16x16xf32>, vector<2x16x8xf32>, vector<2x16x8xf32> -> vector<2x16x8xf32>
    %183 = vector.broadcast %180 : vector<2x16x1xf32> to vector<2x16x8xf32>
    %184 = arith.mulf %182, %183 : vector<2x16x8xf32>
    %185 = vector.shape_cast %184 : vector<2x16x8xf32> to vector<32x8xf32>
    %186 = vector.extract_strided_slice %8 {offsets = [24, 0], sizes = [8, 32], strides = [1, 1]} : vector<32x32xf32> to vector<8x32xf32>
    %cst_66 = arith.constant dense<0.000000e+00> : vector<32x32xf32>
    %187 = tpu.matmul %185, %186, %cst_66 {dimension_numbers = #tpu.dot_dimension_numbers<[1], [0], [0], [1], [0, 0, 1, 1], [], []>} : vector<32x8xf32>, vector<8x32xf32>, vector<32x32xf32> -> vector<32x32xf32>
    %188 = arith.addf %158, %187 : vector<32x32xf32>
    %cst_67 = arith.constant dense<0.000000e+00> : vector<32xf32>
    %189 = vector.multi_reduction <add>, %188, %cst_67 [1] : vector<32x32xf32> to vector<32xf32>
    %190 = vector.shape_cast %189 : vector<32xf32> to vector<32x1xf32>
    %cst_68 = arith.constant 3.200000e+01 : f32
    %191 = vector.broadcast %cst_68 : f32 to vector<32x1xf32>
    %192 = arith.divf %190, %191 : vector<32x1xf32>
    %193 = vector.broadcast %192 : vector<32x1xf32> to vector<32x32xf32>
    %194 = arith.subf %188, %193 : vector<32x32xf32>
    %195 = arith.mulf %194, %194 : vector<32x32xf32>
    %cst_69 = arith.constant dense<0.000000e+00> : vector<32xf32>
    %196 = vector.multi_reduction <add>, %195, %cst_69 [1] : vector<32x32xf32> to vector<32xf32>
    %197 = vector.shape_cast %196 : vector<32xf32> to vector<32x1xf32>
    %cst_70 = arith.constant 3.200000e+01 : f32
    %198 = vector.broadcast %cst_70 : f32 to vector<32x1xf32>
    %199 = arith.divf %197, %198 : vector<32x1xf32>
    %200 = vector.broadcast %192 : vector<32x1xf32> to vector<32x32xf32>
    %201 = arith.subf %188, %200 : vector<32x32xf32>
    %cst_71 = arith.constant 9.99999996E-13 : f32
    %202 = vector.broadcast %cst_71 : f32 to vector<32x1xf32>
    %203 = arith.addf %199, %202 : vector<32x1xf32>
    %204 = math.rsqrt %203 : vector<32x1xf32>
    %205 = vector.broadcast %204 : vector<32x1xf32> to vector<32x32xf32>
    %206 = arith.mulf %201, %205 : vector<32x32xf32>
    %207 = vector.broadcast %18 : vector<1x32xf32> to vector<32x32xf32>
    %208 = arith.mulf %206, %207 : vector<32x32xf32>
    %209 = vector.broadcast %20 : vector<1x32xf32> to vector<32x32xf32>
    %210 = arith.addf %208, %209 : vector<32x32xf32>
    %cst_72 = arith.constant dense<0.000000e+00> : vector<32x128xf32>
    %211 = tpu.matmul %210, %12, %cst_72 {dimension_numbers = #tpu.dot_dimension_numbers<[1], [0], [0], [1], [0, 0, 1, 1], [], []>} : vector<32x32xf32>, vector<32x128xf32>, vector<32x128xf32> -> vector<32x128xf32>
    %212 = vector.broadcast %14 : vector<1x128xf32> to vector<32x128xf32>
    %213 = arith.addf %211, %212 : vector<32x128xf32>
    %214 = arith.mulf %213, %213 : vector<32x128xf32>
    %215 = arith.mulf %213, %214 : vector<32x128xf32>
    %cst_73 = arith.constant 4.471500e-02 : f32
    %216 = vector.broadcast %cst_73 : f32 to vector<32x128xf32>
    %217 = arith.mulf %216, %215 : vector<32x128xf32>
    %218 = arith.addf %213, %217 : vector<32x128xf32>
    %cst_74 = arith.constant 0.797884583 : f32
    %219 = vector.broadcast %cst_74 : f32 to vector<32x128xf32>
    %220 = arith.mulf %219, %218 : vector<32x128xf32>
    %221 = math.tanh %220 : vector<32x128xf32>
    %cst_75 = arith.constant 1.000000e+00 : f32
    %222 = vector.broadcast %cst_75 : f32 to vector<32x128xf32>
    %223 = arith.addf %222, %221 : vector<32x128xf32>
    %cst_76 = arith.constant 5.000000e-01 : f32
    %224 = vector.broadcast %cst_76 : f32 to vector<32x128xf32>
    %225 = arith.mulf %224, %223 : vector<32x128xf32>
    %226 = arith.mulf %213, %225 : vector<32x128xf32>
    %cst_77 = arith.constant dense<0.000000e+00> : vector<32x32xf32>
    %227 = tpu.matmul %226, %26, %cst_77 {dimension_numbers = #tpu.dot_dimension_numbers<[1], [0], [0], [1], [0, 0, 1, 1], [], []>} : vector<32x128xf32>, vector<128x32xf32>, vector<32x32xf32> -> vector<32x32xf32>
    %228 = vector.broadcast %16 : vector<1x32xf32> to vector<32x32xf32>
    %229 = arith.addf %227, %228 : vector<32x32xf32>
    %230 = arith.addf %229, %210 : vector<32x32xf32>
    %cst_78 = arith.constant dense<0.000000e+00> : vector<32xf32>
    %231 = vector.multi_reduction <add>, %230, %cst_78 [1] : vector<32x32xf32> to vector<32xf32>
    %232 = vector.shape_cast %231 : vector<32xf32> to vector<32x1xf32>
    %cst_79 = arith.constant 3.200000e+01 : f32
    %233 = vector.broadcast %cst_79 : f32 to vector<32x1xf32>
    %234 = arith.divf %232, %233 : vector<32x1xf32>
    %235 = vector.broadcast %234 : vector<32x1xf32> to vector<32x32xf32>
    %236 = arith.subf %230, %235 : vector<32x32xf32>
    %237 = arith.mulf %236, %236 : vector<32x32xf32>
    %cst_80 = arith.constant dense<0.000000e+00> : vector<32xf32>
    %238 = vector.multi_reduction <add>, %237, %cst_80 [1] : vector<32x32xf32> to vector<32xf32>
    %239 = vector.shape_cast %238 : vector<32xf32> to vector<32x1xf32>
    %cst_81 = arith.constant 3.200000e+01 : f32
    %240 = vector.broadcast %cst_81 : f32 to vector<32x1xf32>
    %241 = arith.divf %239, %240 : vector<32x1xf32>
    %242 = vector.broadcast %234 : vector<32x1xf32> to vector<32x32xf32>
    %243 = arith.subf %230, %242 : vector<32x32xf32>
    %cst_82 = arith.constant 9.99999996E-13 : f32
    %244 = vector.broadcast %cst_82 : f32 to vector<32x1xf32>
    %245 = arith.addf %241, %244 : vector<32x1xf32>
    %246 = math.rsqrt %245 : vector<32x1xf32>
    %247 = vector.broadcast %246 : vector<32x1xf32> to vector<32x32xf32>
    %248 = arith.mulf %243, %247 : vector<32x32xf32>
    %249 = vector.broadcast %22 : vector<1x32xf32> to vector<32x32xf32>
    %250 = arith.mulf %248, %249 : vector<32x32xf32>
    %251 = vector.broadcast %24 : vector<1x32xf32> to vector<32x32xf32>
    %252 = arith.addf %250, %251 : vector<32x32xf32>
    %253 = vector.shape_cast %252 : vector<32x32xf32> to vector<2x16x32xf32>
    %c0_83 = arith.constant 0 : index
    %c0_84 = arith.constant 0 : index
    %c0_85 = arith.constant 0 : index
    %254 = vector.load %arg5[%c0_83, %c0_84, %c0_85] : memref<2x16x32xf32, #tpu.memory_space<vmem>>, vector<2x16x32xf32>
    tpu.vector_store %arg5[%c0_83, %c0_84, %c0_85], %253 {strides = array<i32>} : memref<2x16x32xf32, #tpu.memory_space<vmem>>, vector<2x16x32xf32>,
    return
  }
  func.func @transform_0(%arg0: i32) -> (i32, i32, i32) {
    %c0_i32 = arith.constant 0 : i32
    %c0_i32_0 = arith.constant 0 : i32
    %c0_i32_1 = arith.constant 0 : i32
    %c0_i32_2 = arith.constant 0 : i32
    return %c0_i32, %c0_i32_0, %c0_i32_1 : i32, i32, i32
  }
  func.func @transform_1(%arg0: i32) -> (i32, i32, i32) {
    %c0_i32 = arith.constant 0 : i32
    %c0_i32_0 = arith.constant 0 : i32
    %c0_i32_1 = arith.constant 0 : i32
    %c0_i32_2 = arith.constant 0 : i32
    return %c0_i32, %c0_i32_0, %c0_i32_1 : i32, i32, i32
  }
  func.func @transform_2(%arg0: i32) -> (i32, i32, i32) {
    %c0_i32 = arith.constant 0 : i32
    %c0_i32_0 = arith.constant 0 : i32
    %c0_i32_1 = arith.constant 0 : i32
    return %arg0, %c0_i32, %c0_i32_0 : i32, i32, i32
  }
  func.func @transform_3(%arg0: i32) -> (i32, i32, i32) {
    %c0_i32 = arith.constant 0 : i32
    %c0_i32_0 = arith.constant 0 : i32
    %c0_i32_1 = arith.constant 0 : i32
    return %arg0, %c0_i32, %c0_i32_0 : i32, i32, i32
  }
  func.func @transform_4(%arg0: i32) -> (i32, i32, i32) {
    %c0_i32 = arith.constant 0 : i32
    %c0_i32_0 = arith.constant 0 : i32
    %c0_i32_1 = arith.constant 0 : i32
    %c0_i32_2 = arith.constant 0 : i32
    return %c0_i32, %c0_i32_0, %c0_i32_1 : i32, i32, i32
  }
}

</mosaic_0001>

<llo_original>
// kernel: tpu_custom_call.1
$region0: #{tpu_custom_call.1}
  #allocation0 [shape = 'u32[]', space=smem, size = 0x4, offset = 0x4, fixed_abs, tag = 'smem constant byte address 0x4 - core index']
  #allocation1 [shape = 'u32[72,128]{1,0:T(1,128)}', space=vmem, size = 0x9000, scoped, tag = 'internal scratch']
  %s0 = inlined_call_operand.vmem [shape: f32[2,16,32], index: 0, kind: input, shape index: {}]
  %s1 = inlined_call_operand.vmem [shape: f32[2,1,16], index: 1, kind: input, shape index: {}]
  %s2 = inlined_call_operand.vmem [shape: f32[2,38,352], index: 2, kind: input, shape index: {}]
  %s3 = inlined_call_operand.vmem [shape: f32[2,128,32], index: 3, kind: input, shape index: {}]
  %s4 = inlined_call_operand.hbm [shape: f32[2,16,32], index: 4, kind: output, shape index: {}]
  %s5 = sld [smem:[#allocation0]]
  $region53: #{tpu_custom_call.1} parent=0
    _
  %s7 = ssub.s32 1, %s5
  %s8 = scalar_select 0, %s7, %s5
  $region1: #{tpu_custom_call.1} parent=0
    #allocation2 [shape = 'u8[16384]{0}', space=vmem, size = 0x4000, scoped, tag = 'output window, operand 0, single buffered']
    #allocation3 [shape = 's32[2]{0}', space=sflag, size = 0x8, scoped, tag = 'scoped memory for tpu_custom_call.1']
    %9 = vsyncpa [#allocation3], 0
    loop: start=0, step=1, limit=4
    $region2: #{tpu_custom_call.1} parent=1 // loop_pre_header
      _
    $region3: #{tpu_custom_call.1} parent=1 // loop_header
      %s11 = sphi 0, %s15
      %p12 = scmp.ge.s32.totalorder %s11, 4
      %s19 = sphi 0, %s19
      %s21 = sphi 0, %s19
      %s22 = sphi 0, %s21
      %s36 = sphi 0, %s22
      %s40 = sphi 0, %s40
      %s42 = sphi 0, %s40
      %s43 = sphi 0, %s42
      %s57 = sphi 0, %s43
      %s63 = sphi 0, %s65
      %s66 = sphi 0, %s63
      %s67 = sphi 0, %s66
      %s83 = sphi 0, %s67
      %s89 = sphi 0, %s91
      %s92 = sphi 0, %s89
      %s93 = sphi 0, %s92
      %s109 = sphi 0, %s93
      %s113 = sphi 0, %s113
      %s115 = sphi 0, %s113
      %s116 = sphi 0, %s115
      %s130 = sphi 0, %s116
    $region4: #{tpu_custom_call.1} parent=1 // loop_header_branch
      %14 = sbr.rel (%p12) target = $region8
    $region5: #{tpu_custom_call.1} parent=1 // loop_body
      %s16 = ssub.s32 %s11, 1
      %s17 = ssub.s32 %s11, 2
      %s18 = sadd.s32 %s11, 1
      %s20 = sadd.s32 %s19, 1
      %p23 = scmp.eq.s32.totalorder %s11, 1
      %p24 = scmp.ne.s32.totalorder %s19, %s21
      %p25 = scmp.eq.s32.totalorder %s11, 0
      %p26 = por %p24, %p25
      %p27 = scmp.ne.s32.totalorder %s19, %s21
      %p28 = scmp.eq.s32.totalorder %s16, 1
      %p29 = por %p27, %p28
      %p30 = scmp.ne.s32.totalorder %s21, %s22
      %p31 = scmp.eq.s32.totalorder %s16, 0
      %p32 = por %p30, %p31
      %p33 = scmp.ne.s32.totalorder %s21, %s22
      %p34 = scmp.eq.s32.totalorder %s17, 1
      %p35 = por %p33, %p34
      %p37 = scmp.ne.s32.totalorder %s22, %s36
      %p38 = scmp.eq.s32.totalorder %s17, 0
      %p39 = por %p37, %p38
      %s41 = sadd.s32 %s40, 1
      %p44 = scmp.eq.s32.totalorder %s11, 1
      %p45 = scmp.ne.s32.totalorder %s40, %s42
      %p46 = scmp.eq.s32.totalorder %s11, 0
      %p47 = por %p45, %p46
      %p48 = scmp.ne.s32.totalorder %s40, %s42
      %p49 = scmp.eq.s32.totalorder %s16, 1
      %p50 = por %p48, %p49
      %p51 = scmp.ne.s32.totalorder %s42, %s43
      %p52 = scmp.eq.s32.totalorder %s16, 0
      %p53 = por %p51, %p52
      %p54 = scmp.ne.s32.totalorder %s42, %s43
      %p55 = scmp.eq.s32.totalorder %s17, 1
      %p56 = por %p54, %p55
      %p58 = scmp.ne.s32.totalorder %s43, %s57
      %p59 = scmp.eq.s32.totalorder %s17, 0
      %p60 = por %p58, %p59
      %s61 = ssub.s32 %s11, %s18
      %p62 = scmp.eq.s32.totalorder %s61, 0
      %s64 = sadd.s32 %s63, 1
      %s65 = scalar_select %p62, %s63, %s64
      %p68 = pneg %p62
      %p69 = scmp.eq.s32.totalorder %s11, 1
      %p70 = por %p68, %p69
      %p71 = scmp.ne.s32.totalorder %s63, %s66
      %p72 = scmp.eq.s32.totalorder %s11, 0
      %p73 = por %p71, %p72
      %p74 = scmp.ne.s32.totalorder %s63, %s66
      %p75 = scmp.eq.s32.totalorder %s16, 1
      %p76 = por %p74, %p75
      %p77 = scmp.ne.s32.totalorder %s66, %s67
      %p78 = scmp.eq.s32.totalorder %s16, 0
      %p79 = por %p77, %p78
      %p80 = scmp.ne.s32.totalorder %s66, %s67
      %p81 = scmp.eq.s32.totalorder %s17, 1
      %p82 = por %p80, %p81
      %p84 = scmp.ne.s32.totalorder %s67, %s83
      %p85 = scmp.eq.s32.totalorder %s17, 0
      %p86 = por %p84, %p85
      %s87 = ssub.s32 %s11, %s18
      %p88 = scmp.eq.s32.totalorder %s87, 0
      %s90 = sadd.s32 %s89, 1
      %s91 = scalar_select %p88, %s89, %s90
      %p94 = pneg %p88
      %p95 = scmp.eq.s32.totalorder %s11, 1
      %p96 = por %p94, %p95
      %p97 = scmp.ne.s32.totalorder %s89, %s92
      %p98 = scmp.eq.s32.totalorder %s11, 0
      %p99 = por %p97, %p98
      %p100 = scmp.ne.s32.totalorder %s89, %s92
      %p101 = scmp.eq.s32.totalorder %s16, 1
      %p102 = por %p100, %p101
      %p103 = scmp.ne.s32.totalorder %s92, %s93
      %p104 = scmp.eq.s32.totalorder %s16, 0
      %p105 = por %p103, %p104
      %p106 = scmp.ne.s32.totalorder %s92, %s93
      %p107 = scmp.eq.s32.totalorder %s17, 1
      %p108 = por %p106, %p107
      %p110 = scmp.ne.s32.totalorder %s93, %s109
      %p111 = scmp.eq.s32.totalorder %s17, 0
      %p112 = por %p110, %p111
      %s114 = sadd.s32 %s113, 1
      %p117 = scmp.eq.s32.totalorder %s11, 1
      %p118 = scmp.ne.s32.totalorder %s113, %s115
      %p119 = scmp.eq.s32.totalorder %s11, 0
      %p120 = por %p118, %p119
      %p121 = scmp.ne.s32.totalorder %s113, %s115
      %p122 = scmp.eq.s32.totalorder %s16, 1
      %p123 = por %p121, %p122
      %p124 = scmp.ne.s32.totalorder %s115, %s116
      %p125 = scmp.eq.s32.totalorder %s16, 0
      %p126 = por %p124, %p125
      %p127 = scmp.ne.s32.totalorder %s115, %s116
      %p128 = scmp.eq.s32.totalorder %s17, 1
      %p129 = por %p127, %p128
      %p131 = scmp.ne.s32.totalorder %s116, %s130
      %p132 = scmp.eq.s32.totalorder %s17, 0
      %p133 = por %p131, %p132
      %p134 = scmp.le.s32.totalorder 1, %s11
      %p135 = scmp.lt.s32.totalorder %s11, 3
      %p136 = pnand %p134, %p135
      %p137 = pneg %p136
      // Predicated region
      $region9: #{tpu_custom_call.1} parent=5 // pred_check
        _
      $region10: #{tpu_custom_call.1} parent=5 // pred_check_branch
        %139 = sbr.rel (%p136) target = $region12
      $region11: #{tpu_custom_call.1} parent=5 // pred_region
        %s140 = ssub.s32 %s11, 1
        // Predicated region
        $region13: #{tpu_custom_call.1} parent=11 // pred_check
          %p141 = pneg %p32
        $region14: #{tpu_custom_call.1} parent=11 // pred_check_branch
          %143 = sbr.rel (%p141) target = $region16
        $region15: #{tpu_custom_call.1} parent=11 // pred_region
          _
        $region16: #{tpu_custom_call.1} parent=11 // pred_fallthru
          _
        // Predicated region
        $region17: #{tpu_custom_call.1} parent=11 // pred_check
          %p144 = pneg %p53
        $region18: #{tpu_custom_call.1} parent=11 // pred_check_branch
          %146 = sbr.rel (%p144) target = $region20
        $region19: #{tpu_custom_call.1} parent=11 // pred_region
          _
        $region20: #{tpu_custom_call.1} parent=11 // pred_fallthru
          _
      $region12: #{tpu_custom_call.1} parent=5 // pred_fallthru
        _
      %p147 = scmp.lt.s32.totalorder %s11, 2
      // Predicated region
      $region21: #{tpu_custom_call.1} parent=5 // pred_check
        %p148 = pneg %p147
      $region22: #{tpu_custom_call.1} parent=5 // pred_check_branch
        %150 = sbr.rel (%p148) target = $region24
      $region23: #{tpu_custom_call.1} parent=5 // pred_region
        // Predicated region
        $region25: #{tpu_custom_call.1} parent=23 // pred_check
          %p151 = pneg %p73
        $region26: #{tpu_custom_call.1} parent=23 // pred_check_branch
          %153 = sbr.rel (%p151) target = $region28
        $region27: #{tpu_custom_call.1} parent=23 // pred_region
          %p154 = scmp.lt.s32.totalorder %s11, 1
          %s155 = scalar_select %p154, %s11, 1
          %s156 = smul.addr %s155, 15
          %s157 = smul.addr %s156, 8
          %s158 = scalar_lea.vmem %s2, %s157
        $region28: #{tpu_custom_call.1} parent=23 // pred_fallthru
          _
        // Predicated region
        $region29: #{tpu_custom_call.1} parent=23 // pred_check
          %p159 = pneg %p99
        $region30: #{tpu_custom_call.1} parent=23 // pred_check_branch
          %161 = sbr.rel (%p159) target = $region32
        $region31: #{tpu_custom_call.1} parent=23 // pred_region
          %p162 = scmp.lt.s32.totalorder %s11, 1
          %s163 = scalar_select %p162, %s11, 1
          %s164 = smul.addr %s163, 16
          %s165 = smul.addr %s164, 8
          %s166 = scalar_lea.vmem %s3, %s165
        $region32: #{tpu_custom_call.1} parent=23 // pred_fallthru
          _
      $region24: #{tpu_custom_call.1} parent=5 // pred_fallthru
        _
      %p167 = scmp.le.s32.totalorder 1, %s11
      %p168 = scmp.lt.s32.totalorder %s11, 3
      %p169 = pnand %p167, %p168
      %p170 = pneg %p169
      // Predicated region
      $region33: #{tpu_custom_call.1} parent=5 // pred_check
        _
      $region34: #{tpu_custom_call.1} parent=5 // pred_check_branch
        %172 = sbr.rel (%p169) target = $region36
      $region35: #{tpu_custom_call.1} parent=5 // pred_region
        %s173 = ssub.s32 %s11, 1
        %p174 = pneg %p32
        %p175 = pneg %p29
        %p176 = pneg %p53
        %p177 = pneg %p50
        %p178 = scmp.lt.s32.totalorder %s16, 1
        %s179 = scalar_select %p178, %s16, 1
        %s180 = smul.addr %s179, 15
        %s181 = smul.addr %s180, 8
        %s182 = scalar_lea.vmem %s2, %s181
        %p183 = pneg %p79
        %p184 = pneg %p76
        %p185 = scmp.lt.s32.totalorder %s16, 1
        %s186 = scalar_select %p185, %s16, 1
        %s187 = smul.addr %s186, 16
        %s188 = smul.addr %s187, 8
        %s189 = scalar_lea.vmem %s3, %s188
        %p190 = pneg %p105
        %p191 = pneg %p102
        %p192 = pneg %p126
        %p193 = pneg %p123
        %p194 = scmp.lt.s32.totalorder %s16, 1
        %s195 = scalar_select %p194, %s16, 1
        %s196 = smul.addr %s195, 15
        %s197 = smul.addr %s196, 8
        %s198 = scalar_lea.vmem %s2, %s197
        %p199 = scmp.lt.s32.totalorder %s16, 1
        %s200 = scalar_select %p199, %s16, 1
        %s201 = smul.addr %s200, 16
        %s202 = smul.addr %s201, 8
        %s203 = scalar_lea.vmem %s3, %s202
        %p204 = scmp.eq.s32.totalorder %s16, 0
        // Predicated region
        $region37: #{tpu_custom_call.1} parent=35 // pred_check
          %p205 = pneg %p204
        $region38: #{tpu_custom_call.1} parent=35 // pred_check_branch
          %207 = sbr.rel (%p205) target = $region40
        $region39: #{tpu_custom_call.1} parent=35 // pred_region
          %v208 = vld [vmem:[%s0] sm:$0xff]
          %v209 = vld [vmem:[%s0 + $0x8] sm:$0xff]
          %v210 = vld [vmem:[%s0 + $0x10] sm:$0xff]
          %v211 = vld [vmem:[%s0 + $0x18] sm:$0xff]
          %vm212 = vcmask 261120
          %213 = vst.msk [vmem:[#allocation2] sm:$0xff] %vm212, %v208
          %214 = vst.msk [vmem:[#allocation2 + $0x8] sm:$0xff] %vm212, %v209
          %215 = vst.msk [vmem:[#allocation2 + $0x10] sm:$0xff] %vm212, %v210
          %216 = vst.msk [vmem:[#allocation2 + $0x18] sm:$0xff] %vm212, %v211
        $region40: #{tpu_custom_call.1} parent=35 // pred_fallthru
          _
        %v217 = vld [vmem:[%s198] sm:$0xff]
        %v218 = vld [vmem:[%s198 + $0x8] sm:$0xff]
        %v219 = vld [vmem:[%s198 + $0x18] sm:$0xff]
        %v220 = vld [vmem:[%s198 + $0x20] sm:$0xff]
        %v221 = vld [vmem:[%s198 + $0x30] sm:$0xff]
        %v222 = vld [vmem:[%s198 + $0x38] sm:$0xff]
        %v223 = vld [vmem:[%s198 + $0x48] sm:$0xff]
        %v224 = vld [vmem:[%s198 + $0x50] sm:$0xff]
        %s225 = scalar_lea.vmem %s198, 96
        %v226 = vld [vmem:[%s225] ss:$8 sm:$0x3]
        %v227 = vld [vmem:[%s198 + $0x68] ss:$0 sm:$0xff]
        %v228 = vld [vmem:[%s198 + $0x10] sm:$0xff]
        %v229 = vld [vmem:[%s198 + $0x28] sm:$0xff]
        %v230 = vld [vmem:[%s198 + $0x40] sm:$0xff]
        %v231 = vld [vmem:[%s198 + $0x58] sm:$0xff]
        %v232 = vld [vmem:[%s198 + $0x70] ss:$0 sm:$0xff]
        %v233 = vld [vmem:[%s198 + $0x61] ss:$0 sm:$0xff]
        %v234 = vld [vmem:[%s198 + $0x62] ss:$0 sm:$0xff]
        %v235 = vld [vmem:[%s198 + $0x63] ss:$0 sm:$0xff]
        %v236 = vld [vmem:[%s198 + $0x64] ss:$0 sm:$0xff]
        %v237 = vld [vmem:[%s198 + $0x65] ss:$0 sm:$0xff]
        %v238 = vld [vmem:[%s203] sm:$0xff]
        %v239 = vld [vmem:[%s203 + $0x8] sm:$0xff]
        %v240 = vld [vmem:[%s203 + $0x10] sm:$0xff]
        %v241 = vld [vmem:[%s203 + $0x18] sm:$0xff]
        %v242 = vld [vmem:[%s203 + $0x20] sm:$0xff]
        %v243 = vld [vmem:[%s203 + $0x28] sm:$0xff]
        %v244 = vld [vmem:[%s203 + $0x30] sm:$0xff]
        %v245 = vld [vmem:[%s203 + $0x38] sm:$0xff]
        %v246 = vld [vmem:[%s203 + $0x40] sm:$0xff]
        %v247 = vld [vmem:[%s203 + $0x48] sm:$0xff]
        %v248 = vld [vmem:[%s203 + $0x50] sm:$0xff]
        %v249 = vld [vmem:[%s203 + $0x58] sm:$0xff]
        %v250 = vld [vmem:[%s203 + $0x60] sm:$0xff]
        %v251 = vld [vmem:[%s203 + $0x68] sm:$0xff]
        %v252 = vld [vmem:[%s203 + $0x70] sm:$0xff]
        %v253 = vld [vmem:[%s203 + $0x78] sm:$0xff]
        %v254 = vld [vmem:[#allocation2] sm:$0xff]
        %v255 = vld [vmem:[#allocation2 + $0x8] sm:$0xff]
        %v256 = vld [vmem:[#allocation2 + $0x10] sm:$0xff]
        %v257 = vld [vmem:[#allocation2 + $0x18] sm:$0xff]
        %v258 = vld [vmem:[%s1] sm:$0x1]
        %v259 = vld [vmem:[%s1 + $0x1] sm:$0x1]
        %v260 = vlaneseq
        %v261 = vshrl.u32 %v260, 7
        %v262 = vadd.s32 %v261, 8
        %v263 = vadd.s32 %v261, 16
        %v264 = vadd.s32 %v261, 24
        %vm265 = vcmp.lt.s32.totalorder %v261, 0
        %v266 = vsub.s32 0, %v261
        %v267 = vsel %vm265, %v266, %v261
        %v268 = vshrl.u32 %v267, 4
        %v269 = vand.u32 %v267, 15
        %v270 = vsub.s32 0, %v269
        %v271 = vsel %vm265, %v270, %v269
        %vm272 = vcmp.lt.s32.totalorder %v262, 0
        %v273 = vsub.s32 0, %v262
        %v274 = vsel %vm272, %v273, %v262
        %v275 = vshrl.u32 %v274, 4
        %v276 = vand.u32 %v274, 15
        %v277 = vsub.s32 0, %v276
        %v278 = vsel %vm272, %v277, %v276
        %vm279 = vcmp.lt.s32.totalorder %v263, 0
        %v280 = vsub.s32 0, %v263
        %v281 = vsel %vm279, %v280, %v263
        %v282 = vshrl.u32 %v281, 4
        %v283 = vand.u32 %v281, 15
        %v284 = vsub.s32 0, %v283
        %v285 = vsel %vm279, %v284, %v283
        %vm286 = vcmp.lt.s32.totalorder %v264, 0
        %v287 = vsub.s32 0, %v264
        %v288 = vsel %vm286, %v287, %v264
        %v289 = vshrl.u32 %v288, 4
        %v290 = vand.u32 %v288, 15
        %v291 = vsub.s32 0, %v290
        %v292 = vsel %vm286, %v291, %v290
        %vm293 = vcmp.ne.s32.totalorder %v271, 0
        %vm294 = vcmp.ne.s32.totalorder %v278, 0
        %vm295 = vcmp.ne.s32.totalorder %v285, 0
        %vm296 = vcmp.ne.s32.totalorder %v292, 0
        %vm297 = vcmp.lt.s32.totalorder %v271, 0
        %vm298 = vcmp.lt.s32.totalorder %v278, 0
        %vm299 = vcmp.lt.s32.totalorder %v285, 0
        %vm300 = vcmp.lt.s32.totalorder %v292, 0
        %vm301 = vmand %vm297, %vm293
        %vm302 = vmand %vm298, %vm294
        %vm303 = vmand %vm299, %vm295
        %vm304 = vmand %vm300, %vm296
        %v305 = vadd.s32 %v271, 16
        %v306 = vadd.s32 %v278, 16
        %v307 = vadd.s32 %v285, 16
        %v308 = vadd.s32 %v292, 16
        %v309 = vsel %vm301, %v305, %v271
        %v310 = vsel %vm302, %v306, %v278
        %v311 = vsel %vm303, %v307, %v285
        %v312 = vsel %vm304, %v308, %v292
        %vm313 = vcmp.lt.s32.totalorder %v309, 8
        %vm314 = vcmp.lt.s32.totalorder %v310, 8
        %vm315 = vcmp.lt.s32.totalorder %v311, 8
        %vm316 = vcmp.lt.s32.totalorder %v312, 8
        %v317 = vlaneseq
        %v318 = vand.u32 %v317, 127
        %vm319 = vcmp.lt.s32.totalorder %v318, 8
        %v321 = vperm.slane %v226, 0
        %v322 = vperm.slane %v226, 1
        %vm325 = vcmask 261120
        %v327 = vsel %vm325, %v254, 0
        %v330 = vsel %vm325, %v255, 0
        %v333 = vsel %vm325, %v256, 0
        %v336 = vsel %vm325, %v257, 0
        %338 = vmatpush.msra.mxu0 0.0
        %339 = vmatpush.msra.mxu0 0.0
        %340 = vmatpush.msra.mxu0 0.0
        %341 = vmatpush.msra.mxu0 0.0
        %342 = vmatpush.msra.mxu0 0.0
        %343 = vmatpush.msra.mxu0 0.0
        %344 = vmatpush.msra.mxu0 0.0
        %345 = vmatpush.msra.mxu0 0.0
        %346 = vmatpush.msra.mxu0 0.0
        %347 = vmatpush.msra.mxu0 0.0
        %348 = vmatpush.msra.mxu0 0.0
        %349 = vmatpush.msra.mxu0 0.0
        %350 = vmatpush.msra.mxu0 %v223
        %351 = vmatpush.msra.mxu0 %v221
        %352 = vmatpush.msra.mxu0 %v219
        %353 = vmatpush.msra.mxu0 %v217
        %354 = vmatmul.f32.gmra.mxu0 %v327
        %v355 = vpop.f32.mrf.mxu0
        %v356 = vadd.f32 %v321, %v355
        %357 = vmatmul.f32.gmra.mxu0 %v330
        %v358 = vpop.f32.mrf.mxu0
        %v359 = vadd.f32 %v321, %v358
        %360 = vmatmul.f32.gmra.mxu0 %v333
        %v361 = vpop.f32.mrf.mxu0
        %v362 = vadd.f32 %v321, %v361
        %363 = vmatmul.f32.gmra.mxu0 %v336
        %v364 = vpop.f32.mrf.mxu0
        %v365 = vadd.f32 %v321, %v364
        %366 = vdwg.mxu0
        %367 = vmatpush.msra.mxu0 0.0
        %368 = vmatpush.msra.mxu0 0.0
        %369 = vmatpush.msra.mxu0 0.0
        %370 = vmatpush.msra.mxu0 0.0
        %371 = vmatpush.msra.mxu0 0.0
        %372 = vmatpush.msra.mxu0 0.0
        %373 = vmatpush.msra.mxu0 0.0
        %374 = vmatpush.msra.mxu0 0.0
        %375 = vmatpush.msra.mxu0 0.0
        %376 = vmatpush.msra.mxu0 0.0
        %377 = vmatpush.msra.mxu0 0.0
        %378 = vmatpush.msra.mxu0 0.0
        %379 = vmatpush.msra.mxu0 %v224
        %380 = vmatpush.msra.mxu0 %v222
        %381 = vmatpush.msra.mxu0 %v220
        %382 = vmatpush.msra.mxu0 %v218
        %383 = vmatmul.f32.gmra.mxu0 %v327
        %v384 = vpop.f32.mrf.mxu0
        %v385 = vadd.f32 %v322, %v384
        %386 = vmatmul.f32.gmra.mxu0 %v330
        %v387 = vpop.f32.mrf.mxu0
        %v388 = vadd.f32 %v322, %v387
        %389 = vmatmul.f32.gmra.mxu0 %v333
        %v390 = vpop.f32.mrf.mxu0
        %v391 = vadd.f32 %v322, %v390
        %392 = vmatmul.f32.gmra.mxu0 %v336
        %v393 = vpop.f32.mrf.mxu0
        %v394 = vadd.f32 %v322, %v393
        %395 = vdwg.mxu0
        %400 = vrot.lane.b32.xlu0 %v356, 64
        %v401 = vpop.permute.xlu0 %400
        %402 = vrot.lane.b32.xlu0 %v359, 64
        %v403 = vpop.permute.xlu0 %402
        %404 = vrot.lane.b32.xlu0 %v362, 64
        %v405 = vpop.permute.xlu0 %404
        %406 = vrot.lane.b32.xlu0 %v365, 64
        %v407 = vpop.permute.xlu0 %406
        %v412 = vsel %vm313, %v356, %v401
        %v413 = vsel %vm314, %v359, %v403
        %v414 = vsel %vm315, %v362, %v405
        %v415 = vsel %vm316, %v365, %v407
        %417 = vrot.lane.b32.xlu0 %v227, 64
        %v418 = vpop.permute.xlu0 %417
        %v420 = vadd.f32 %v254, %v418
        %v421 = vadd.f32 %v255, %v418
        %v422 = vadd.f32 %v256, %v418
        %v423 = vadd.f32 %v257, %v418
        %vm424 = vcmask 64512
        %v426 = vsel %vm424, %v412, 0
        %v429 = vsel %vm424, %v413, 0
        %v432 = vsel %vm424, %v385, 0
        %v435 = vsel %vm424, %v388, 0
        %437 = vmatpush.xpose.msra.mxu0 0.0
        %438 = vmatpush.xpose.msra.mxu0 0.0
        %439 = vmatpush.xpose.msra.mxu0 0.0
        %440 = vmatpush.xpose.msra.mxu0 0.0
        %441 = vmatpush.xpose.msra.mxu0 0.0
        %442 = vmatpush.xpose.msra.mxu0 0.0
        %443 = vmatpush.xpose.msra.mxu0 0.0
        %444 = vmatpush.xpose.msra.mxu0 0.0
        %445 = vmatpush.xpose.msra.mxu0 0.0
        %446 = vmatpush.xpose.msra.mxu0 0.0
        %447 = vmatpush.xpose.msra.mxu0 0.0
        %448 = vmatpush.xpose.msra.mxu0 0.0
        %449 = vmatpush.xpose.msra.mxu0 0.0
        %450 = vmatpush.xpose.msra.mxu0 0.0
        %451 = vmatpush.xpose.msra.mxu0 %v435
        %452 = vmatpush.xpose.msra.mxu0 %v432
        %453 = vmatmul.f32.gmra.mxu0 %v426
        %v454 = vpop.f32.mrf.mxu0
        %v455 = vadd.f32 0.0, %v454
        %456 = vmatmul.f32.gmra.mxu0 %v429
        %v457 = vpop.f32.mrf.mxu0
        %v458 = vadd.f32 0.0, %v457
        %459 = vdwg.mxu0
        %v461 = vsel %vm424, %v414, 0
        %v464 = vsel %vm424, %v415, 0
        %v467 = vsel %vm424, %v391, 0
        %v470 = vsel %vm424, %v394, 0
        %472 = vmatpush.xpose.msra.mxu0 0.0
        %473 = vmatpush.xpose.msra.mxu0 0.0
        %474 = vmatpush.xpose.msra.mxu0 0.0
        %475 = vmatpush.xpose.msra.mxu0 0.0
        %476 = vmatpush.xpose.msra.mxu0 0.0
        %477 = vmatpush.xpose.msra.mxu0 0.0
        %478 = vmatpush.xpose.msra.mxu0 0.0
        %479 = vmatpush.xpose.msra.mxu0 0.0
        %480 = vmatpush.xpose.msra.mxu0 0.0
        %481 = vmatpush.xpose.msra.mxu0 0.0
        %482 = vmatpush.xpose.msra.mxu0 0.0
        %483 = vmatpush.xpose.msra.mxu0 0.0
        %484 = vmatpush.xpose.msra.mxu0 0.0
        %485 = vmatpush.xpose.msra.mxu0 0.0
        %486 = vmatpush.xpose.msra.mxu0 %v470
        %487 = vmatpush.xpose.msra.mxu0 %v467
        %488 = vmatmul.f32.gmra.mxu0 %v461
        %v489 = vpop.f32.mrf.mxu0
        %v490 = vadd.f32 0.0, %v489
        %491 = vmatmul.f32.gmra.mxu0 %v464
        %v492 = vpop.f32.mrf.mxu0
        %v493 = vadd.f32 0.0, %v492
        %494 = vdwg.mxu0
        %495 = vrot.lane.b32.xlu0 %v412, 96
        %v496 = vpop.permute.xlu0 %495
        %497 = vrot.lane.b32.xlu0 %v413, 96
        %v498 = vpop.permute.xlu0 %497
        %v499 = vsel %vm424, %v496, 0
        %v501 = vsel %vm424, %v498, 0
        %503 = vmatpush.xpose.msra.mxu0 0.0
        %504 = vmatpush.xpose.msra.mxu0 0.0
        %505 = vmatpush.xpose.msra.mxu0 0.0
        %506 = vmatpush.xpose.msra.mxu0 0.0
        %507 = vmatpush.xpose.msra.mxu0 0.0
        %508 = vmatpush.xpose.msra.mxu0 0.0
        %509 = vmatpush.xpose.msra.mxu0 0.0
        %510 = vmatpush.xpose.msra.mxu0 0.0
        %511 = vmatpush.xpose.msra.mxu0 0.0
        %512 = vmatpush.xpose.msra.mxu0 0.0
        %513 = vmatpush.xpose.msra.mxu0 0.0
        %514 = vmatpush.xpose.msra.mxu0 0.0
        %515 = vmatpush.xpose.msra.mxu0 0.0
        %516 = vmatpush.xpose.msra.mxu0 0.0
        %517 = vmatpush.xpose.msra.mxu0 %v435
        %518 = vmatpush.xpose.msra.mxu0 %v432
        %519 = vmatmul.f32.gmra.mxu0 %v499
        %v520 = vpop.f32.mrf.mxu0
        %v521 = vadd.f32 0.0, %v520
        %522 = vmatmul.f32.gmra.mxu0 %v501
        %v523 = vpop.f32.mrf.mxu0
        %v524 = vadd.f32 0.0, %v523
        %525 = vdwg.mxu0
        %526 = vrot.lane.b32.xlu0 %v414, 96
        %v527 = vpop.permute.xlu0 %526
        %528 = vrot.lane.b32.xlu0 %v415, 96
        %v529 = vpop.permute.xlu0 %528
        %v530 = vsel %vm424, %v527, 0
        %v532 = vsel %vm424, %v529, 0
        %534 = vmatpush.xpose.msra.mxu0 0.0
        %535 = vmatpush.xpose.msra.mxu0 0.0
        %536 = vmatpush.xpose.msra.mxu0 0.0
        %537 = vmatpush.xpose.msra.mxu0 0.0
        %538 = vmatpush.xpose.msra.mxu0 0.0
        %539 = vmatpush.xpose.msra.mxu0 0.0
        %540 = vmatpush.xpose.msra.mxu0 0.0
        %541 = vmatpush.xpose.msra.mxu0 0.0
        %542 = vmatpush.xpose.msra.mxu0 0.0
        %543 = vmatpush.xpose.msra.mxu0 0.0
        %544 = vmatpush.xpose.msra.mxu0 0.0
        %545 = vmatpush.xpose.msra.mxu0 0.0
        %546 = vmatpush.xpose.msra.mxu0 0.0
        %547 = vmatpush.xpose.msra.mxu0 0.0
        %548 = vmatpush.xpose.msra.mxu0 %v470
        %549 = vmatpush.xpose.msra.mxu0 %v467
        %550 = vmatmul.f32.gmra.mxu0 %v530
        %v551 = vpop.f32.mrf.mxu0
        %v552 = vadd.f32 0.0, %v551
        %553 = vmatmul.f32.gmra.mxu0 %v532
        %v554 = vpop.f32.mrf.mxu0
        %v555 = vadd.f32 0.0, %v554
        %556 = vdwg.mxu0
        %v557 = vsel %vm319, 1, 0
        %vm558 = vcmp.eq.s32.totalorder %v557, 1
        %v559 = vsel %vm558, %v455, %v521
        %v560 = vsel %vm558, %v458, %v524
        %v561 = vsel %vm558, %v490, %v552
        %v562 = vsel %vm558, %v493, %v555
        %v565 = vperm.slane %v258, 0
        %v566 = vperm.slane %v259, 0
        %v569 = vadd.f32 %v559, %v565
        %v570 = vadd.f32 %v560, %v565
        %v571 = vadd.f32 %v561, %v566
        %v572 = vadd.f32 %v562, %v566
        %vm573 = vcmask 130048
        %v574 = vsel %vm573, %v569, -inf
        %575 = vmax.xlane.f32.xlu0 %v574
        %v576 = vpop.xlane.xlu0 %575
        %v577 = vsel %vm573, %v570, -inf
        %578 = vmax.xlane.f32.xlu0 %v577
        %v579 = vpop.xlane.xlu0 %578
        %v580 = vsel %vm573, %v571, -inf
        %581 = vmax.xlane.f32.xlu0 %v580
        %v582 = vpop.xlane.xlu0 %581
        %v583 = vsel %vm573, %v572, -inf
        %584 = vmax.xlane.f32.xlu0 %v583
        %v585 = vpop.xlane.xlu0 %584
        %v586 = vsub.f32 %v569, %v576
        %v587 = vsub.f32 %v570, %v579
        %v588 = vsub.f32 %v571, %v582
        %v589 = vsub.f32 %v572, %v585
        %v590 = vmul.f32 %v586, 1.442695
        %v591 = vpow.pop %v590
        %v592 = vmul.f32 %v587, 1.442695
        %v593 = vpow.pop %v592
        %v594 = vmul.f32 %v588, 1.442695
        %v595 = vpow.pop %v594
        %v596 = vmul.f32 %v589, 1.442695
        %v597 = vpow.pop %v596
        %v598 = vsel %vm573, %v591, 0.0
        %599 = vadd.xlane.f32.xlu0 %v598
        %v600 = vpop.xlane.xlu0 %599
        %v601 = vsel %vm573, %v593, 0.0
        %602 = vadd.xlane.f32.xlu0 %v601
        %v603 = vpop.xlane.xlu0 %602
        %v604 = vsel %vm573, %v595, 0.0
        %605 = vadd.xlane.f32.xlu0 %v604
        %v606 = vpop.xlane.xlu0 %605
        %v607 = vsel %vm573, %v597, 0.0
        %608 = vadd.xlane.f32.xlu0 %v607
        %v609 = vpop.xlane.xlu0 %608
        %v610 = vrcp.pop %v600
        %v611 = vrcp.pop %v603
        %v612 = vrcp.pop %v606
        %v613 = vrcp.pop %v609
        %v614 = vmul.f32 %v600, %v610
        %v615 = vmul.f32 %v603, %v611
        %v616 = vmul.f32 %v606, %v612
        %v617 = vmul.f32 %v609, %v613
        %v618 = vsub.f32 2.0, %v614
        %v619 = vsub.f32 2.0, %v615
        %v620 = vsub.f32 2.0, %v616
        %v621 = vsub.f32 2.0, %v617
        %v622 = vmul.f32 %v610, %v618
        %v623 = vmul.f32 %v611, %v619
        %v624 = vmul.f32 %v612, %v620
        %v625 = vmul.f32 %v613, %v621
        %626 = vrot.lane.b32.xlu0 %v385, 96
        %v627 = vpop.permute.xlu0 %626
        %628 = vrot.lane.b32.xlu0 %v388, 96
        %v629 = vpop.permute.xlu0 %628
        %v633 = vsel %vm573, %v591, 0
        %v636 = vsel %vm573, %v593, 0
        %638 = vmatpush.msra.mxu0 0.0
        %639 = vmatpush.msra.mxu0 0.0
        %640 = vmatpush.msra.mxu0 0.0
        %641 = vmatpush.msra.mxu0 0.0
        %642 = vmatpush.msra.mxu0 0.0
        %643 = vmatpush.msra.mxu0 0.0
        %644 = vmatpush.msra.mxu0 0.0
        %645 = vmatpush.msra.mxu0 0.0
        %646 = vmatpush.msra.mxu0 0.0
        %647 = vmatpush.msra.mxu0 0.0
        %648 = vmatpush.msra.mxu0 0.0
        %649 = vmatpush.msra.mxu0 0.0
        %650 = vmatpush.msra.mxu0 0.0
        %651 = vmatpush.msra.mxu0 0.0
        %652 = vmatpush.msra.mxu0 %v629
        %653 = vmatpush.msra.mxu0 %v627
        %654 = vmatmul.f32.gmra.mxu0 %v633
        %v655 = vpop.f32.mrf.mxu0
        %v656 = vadd.f32 0.0, %v655
        %657 = vmatmul.f32.gmra.mxu0 %v636
        %v658 = vpop.f32.mrf.mxu0
        %v659 = vadd.f32 0.0, %v658
        %660 = vdwg.mxu0
        %661 = vrot.lane.b32.xlu0 %v391, 96
        %v662 = vpop.permute.xlu0 %661
        %663 = vrot.lane.b32.xlu0 %v394, 96
        %v664 = vpop.permute.xlu0 %663
        %v668 = vsel %vm573, %v595, 0
        %v671 = vsel %vm573, %v597, 0
        %673 = vmatpush.msra.mxu0 0.0
        %674 = vmatpush.msra.mxu0 0.0
        %675 = vmatpush.msra.mxu0 0.0
        %676 = vmatpush.msra.mxu0 0.0
        %677 = vmatpush.msra.mxu0 0.0
        %678 = vmatpush.msra.mxu0 0.0
        %679 = vmatpush.msra.mxu0 0.0
        %680 = vmatpush.msra.mxu0 0.0
        %681 = vmatpush.msra.mxu0 0.0
        %682 = vmatpush.msra.mxu0 0.0
        %683 = vmatpush.msra.mxu0 0.0
        %684 = vmatpush.msra.mxu0 0.0
        %685 = vmatpush.msra.mxu0 0.0
        %686 = vmatpush.msra.mxu0 0.0
        %687 = vmatpush.msra.mxu0 %v664
        %688 = vmatpush.msra.mxu0 %v662
        %689 = vmatmul.f32.gmra.mxu0 %v668
        %v690 = vpop.f32.mrf.mxu0
        %v691 = vadd.f32 0.0, %v690
        %692 = vmatmul.f32.gmra.mxu0 %v671
        %v693 = vpop.f32.mrf.mxu0
        %v694 = vadd.f32 0.0, %v693
        %695 = vdwg.mxu0
        %v696 = vmul.f32 %v656, %v622
        %v697 = vmul.f32 %v659, %v623
        %v698 = vmul.f32 %v691, %v624
        %v699 = vmul.f32 %v694, %v625
        %701 = vrot.lane.b32.xlu0 %v218, 64
        %v702 = vpop.permute.xlu0 %701
        %v705 = vsel %vm424, %v696, 0
        %v708 = vsel %vm424, %v697, 0
        %v711 = vsel %vm424, %v698, 0
        %v714 = vsel %vm424, %v699, 0
        %716 = vmatpush.msra.mxu0 0.0
        %717 = vmatpush.msra.mxu0 0.0
        %718 = vmatpush.msra.mxu0 0.0
        %719 = vmatpush.msra.mxu0 0.0
        %720 = vmatpush.msra.mxu0 0.0
        %721 = vmatpush.msra.mxu0 0.0
        %722 = vmatpush.msra.mxu0 0.0
        %723 = vmatpush.msra.mxu0 0.0
        %724 = vmatpush.msra.mxu0 0.0
        %725 = vmatpush.msra.mxu0 0.0
        %726 = vmatpush.msra.mxu0 0.0
        %727 = vmatpush.msra.mxu0 0.0
        %728 = vmatpush.msra.mxu0 0.0
        %729 = vmatpush.msra.mxu0 0.0
        %730 = vmatpush.msra.mxu0 0.0
        %731 = vmatpush.msra.mxu0 %v702
        %732 = vmatmul.f32.gmra.mxu0 %v705
        %v733 = vpop.f32.mrf.mxu0
        %v734 = vadd.f32 0.0, %v733
        %735 = vmatmul.f32.gmra.mxu0 %v708
        %v736 = vpop.f32.mrf.mxu0
        %v737 = vadd.f32 0.0, %v736
        %738 = vmatmul.f32.gmra.mxu0 %v711
        %v739 = vpop.f32.mrf.mxu0
        %v740 = vadd.f32 0.0, %v739
        %741 = vmatmul.f32.gmra.mxu0 %v714
        %v742 = vpop.f32.mrf.mxu0
        %v743 = vadd.f32 0.0, %v742
        %744 = vdwg.mxu0
        %v745 = vadd.f32 %v420, %v734
        %v746 = vadd.f32 %v421, %v737
        %v747 = vadd.f32 %v422, %v740
        %v748 = vadd.f32 %v423, %v743
        %749 = vrot.lane.b32.xlu0 %v412, 120
        %v750 = vpop.permute.xlu0 %749
        %751 = vrot.lane.b32.xlu0 %v413, 120
        %v752 = vpop.permute.xlu0 %751
        %753 = vrot.lane.b32.xlu0 %v385, 120
        %v754 = vpop.permute.xlu0 %753
        %755 = vrot.lane.b32.xlu0 %v388, 120
        %v756 = vpop.permute.xlu0 %755
        %v757 = vsel %vm424, %v750, 0
        %v759 = vsel %vm424, %v752, 0
        %v761 = vsel %vm424, %v754, 0
        %v763 = vsel %vm424, %v756, 0
        %765 = vmatpush.xpose.msra.mxu0 0.0
        %766 = vmatpush.xpose.msra.mxu0 0.0
        %767 = vmatpush.xpose.msra.mxu0 0.0
        %768 = vmatpush.xpose.msra.mxu0 0.0
        %769 = vmatpush.xpose.msra.mxu0 0.0
        %770 = vmatpush.xpose.msra.mxu0 0.0
        %771 = vmatpush.xpose.msra.mxu0 0.0
        %772 = vmatpush.xpose.msra.mxu0 0.0
        %773 = vmatpush.xpose.msra.mxu0 0.0
        %774 = vmatpush.xpose.msra.mxu0 0.0
        %775 = vmatpush.xpose.msra.mxu0 0.0
        %776 = vmatpush.xpose.msra.mxu0 0.0
        %777 = vmatpush.xpose.msra.mxu0 0.0
        %778 = vmatpush.xpose.msra.mxu0 0.0
        %779 = vmatpush.xpose.msra.mxu0 %v763
        %780 = vmatpush.xpose.msra.mxu0 %v761
        %781 = vmatmul.f32.gmra.mxu0 %v757
        %v782 = vpop.f32.mrf.mxu0
        %v783 = vadd.f32 0.0, %v782
        %784 = vmatmul.f32.gmra.mxu0 %v759
        %v785 = vpop.f32.mrf.mxu0
        %v786 = vadd.f32 0.0, %v785
        %787 = vdwg.mxu0
        %788 = vrot.lane.b32.xlu0 %v414, 120
        %v789 = vpop.permute.xlu0 %788
        %790 = vrot.lane.b32.xlu0 %v415, 120
        %v791 = vpop.permute.xlu0 %790
        %792 = vrot.lane.b32.xlu0 %v391, 120
        %v793 = vpop.permute.xlu0 %792
        %794 = vrot.lane.b32.xlu0 %v394, 120
        %v795 = vpop.permute.xlu0 %794
        %v796 = vsel %vm424, %v789, 0
        %v798 = vsel %vm424, %v791, 0
        %v800 = vsel %vm424, %v793, 0
        %v802 = vsel %vm424, %v795, 0
        %804 = vmatpush.xpose.msra.mxu0 0.0
        %805 = vmatpush.xpose.msra.mxu0 0.0
        %806 = vmatpush.xpose.msra.mxu0 0.0
        %807 = vmatpush.xpose.msra.mxu0 0.0
        %808 = vmatpush.xpose.msra.mxu0 0.0
        %809 = vmatpush.xpose.msra.mxu0 0.0
        %810 = vmatpush.xpose.msra.mxu0 0.0
        %811 = vmatpush.xpose.msra.mxu0 0.0
        %812 = vmatpush.xpose.msra.mxu0 0.0
        %813 = vmatpush.xpose.msra.mxu0 0.0
        %814 = vmatpush.xpose.msra.mxu0 0.0
        %815 = vmatpush.xpose.msra.mxu0 0.0
        %816 = vmatpush.xpose.msra.mxu0 0.0
        %817 = vmatpush.xpose.msra.mxu0 0.0
        %818 = vmatpush.xpose.msra.mxu0 %v802
        %819 = vmatpush.xpose.msra.mxu0 %v800
        %820 = vmatmul.f32.gmra.mxu0 %v796
        %v821 = vpop.f32.mrf.mxu0
        %v822 = vadd.f32 0.0, %v821
        %823 = vmatmul.f32.gmra.mxu0 %v798
        %v824 = vpop.f32.mrf.mxu0
        %v825 = vadd.f32 0.0, %v824
        %826 = vdwg.mxu0
        %827 = vrot.lane.b32.xlu0 %v412, 88
        %v828 = vpop.permute.xlu0 %827
        %829 = vrot.lane.b32.xlu0 %v413, 88
        %v830 = vpop.permute.xlu0 %829
        %v831 = vsel %vm424, %v828, 0
        %v833 = vsel %vm424, %v830, 0
        %835 = vmatpush.xpose.msra.mxu0 0.0
        %836 = vmatpush.xpose.msra.mxu0 0.0
        %837 = vmatpush.xpose.msra.mxu0 0.0
        %838 = vmatpush.xpose.msra.mxu0 0.0
        %839 = vmatpush.xpose.msra.mxu0 0.0
        %840 = vmatpush.xpose.msra.mxu0 0.0
        %841 = vmatpush.xpose.msra.mxu0 0.0
        %842 = vmatpush.xpose.msra.mxu0 0.0
        %843 = vmatpush.xpose.msra.mxu0 0.0
        %844 = vmatpush.xpose.msra.mxu0 0.0
        %845 = vmatpush.xpose.msra.mxu0 0.0
        %846 = vmatpush.xpose.msra.mxu0 0.0
        %847 = vmatpush.xpose.msra.mxu0 0.0
        %848 = vmatpush.xpose.msra.mxu0 0.0
        %849 = vmatpush.xpose.msra.mxu0 %v763
        %850 = vmatpush.xpose.msra.mxu0 %v761
        %851 = vmatmul.f32.gmra.mxu0 %v831
        %v852 = vpop.f32.mrf.mxu0
        %v853 = vadd.f32 0.0, %v852
        %854 = vmatmul.f32.gmra.mxu0 %v833
        %v855 = vpop.f32.mrf.mxu0
        %v856 = vadd.f32 0.0, %v855
        %857 = vdwg.mxu0
        %858 = vrot.lane.b32.xlu0 %v414, 88
        %v859 = vpop.permute.xlu0 %858
        %860 = vrot.lane.b32.xlu0 %v415, 88
        %v861 = vpop.permute.xlu0 %860
        %v862 = vsel %vm424, %v859, 0
        %v864 = vsel %vm424, %v861, 0
        %866 = vmatpush.xpose.msra.mxu0 0.0
        %867 = vmatpush.xpose.msra.mxu0 0.0
        %868 = vmatpush.xpose.msra.mxu0 0.0
        %869 = vmatpush.xpose.msra.mxu0 0.0
        %870 = vmatpush.xpose.msra.mxu0 0.0
        %871 = vmatpush.xpose.msra.mxu0 0.0
        %872 = vmatpush.xpose.msra.mxu0 0.0
        %873 = vmatpush.xpose.msra.mxu0 0.0
        %874 = vmatpush.xpose.msra.mxu0 0.0
        %875 = vmatpush.xpose.msra.mxu0 0.0
        %876 = vmatpush.xpose.msra.mxu0 0.0
        %877 = vmatpush.xpose.msra.mxu0 0.0
        %878 = vmatpush.xpose.msra.mxu0 0.0
        %879 = vmatpush.xpose.msra.mxu0 0.0
        %880 = vmatpush.xpose.msra.mxu0 %v802
        %881 = vmatpush.xpose.msra.mxu0 %v800
        %882 = vmatmul.f32.gmra.mxu0 %v862
        %v883 = vpop.f32.mrf.mxu0
        %v884 = vadd.f32 0.0, %v883
        %885 = vmatmul.f32.gmra.mxu0 %v864
        %v886 = vpop.f32.mrf.mxu0
        %v887 = vadd.f32 0.0, %v886
        %888 = vdwg.mxu0
        %v889 = vsel %vm558, %v783, %v853
        %v890 = vsel %vm558, %v786, %v856
        %v891 = vsel %vm558, %v822, %v884
        %v892 = vsel %vm558, %v825, %v887
        %v893 = vadd.f32 %v889, %v565
        %v894 = vadd.f32 %v890, %v565
        %v895 = vadd.f32 %v891, %v566
        %v896 = vadd.f32 %v892, %v566
        %v897 = vsel %vm573, %v893, -inf
        %898 = vmax.xlane.f32.xlu0 %v897
        %v899 = vpop.xlane.xlu0 %898
        %v900 = vsel %vm573, %v894, -inf
        %901 = vmax.xlane.f32.xlu0 %v900
        %v902 = vpop.xlane.xlu0 %901
        %v903 = vsel %vm573, %v895, -inf
        %904 = vmax.xlane.f32.xlu0 %v903
        %v905 = vpop.xlane.xlu0 %904
        %v906 = vsel %vm573, %v896, -inf
        %907 = vmax.xlane.f32.xlu0 %v906
        %v908 = vpop.xlane.xlu0 %907
        %v909 = vsub.f32 %v893, %v899
        %v910 = vsub.f32 %v894, %v902
        %v911 = vsub.f32 %v895, %v905
        %v912 = vsub.f32 %v896, %v908
        %v913 = vmul.f32 %v909, 1.442695
        %v914 = vpow.pop %v913
        %v915 = vmul.f32 %v910, 1.442695
        %v916 = vpow.pop %v915
        %v917 = vmul.f32 %v911, 1.442695
        %v918 = vpow.pop %v917
        %v919 = vmul.f32 %v912, 1.442695
        %v920 = vpow.pop %v919
        %v921 = vsel %vm573, %v914, 0.0
        %922 = vadd.xlane.f32.xlu0 %v921
        %v923 = vpop.xlane.xlu0 %922
        %v924 = vsel %vm573, %v916, 0.0
        %925 = vadd.xlane.f32.xlu0 %v924
        %v926 = vpop.xlane.xlu0 %925
        %v927 = vsel %vm573, %v918, 0.0
        %928 = vadd.xlane.f32.xlu0 %v927
        %v929 = vpop.xlane.xlu0 %928
        %v930 = vsel %vm573, %v920, 0.0
        %931 = vadd.xlane.f32.xlu0 %v930
        %v932 = vpop.xlane.xlu0 %931
        %v933 = vrcp.pop %v923
        %v934 = vrcp.pop %v926
        %v935 = vrcp.pop %v929
        %v936 = vrcp.pop %v932
        %v937 = vmul.f32 %v923, %v933
        %v938 = vmul.f32 %v926, %v934
        %v939 = vmul.f32 %v929, %v935
        %v940 = vmul.f32 %v932, %v936
        %v941 = vsub.f32 2.0, %v937
        %v942 = vsub.f32 2.0, %v938
        %v943 = vsub.f32 2.0, %v939
        %v944 = vsub.f32 2.0, %v940
        %v945 = vmul.f32 %v933, %v941
        %v946 = vmul.f32 %v934, %v942
        %v947 = vmul.f32 %v935, %v943
        %v948 = vmul.f32 %v936, %v944
        %949 = vrot.lane.b32.xlu0 %v385, 88
        %v950 = vpop.permute.xlu0 %949
        %951 = vrot.lane.b32.xlu0 %v388, 88
        %v952 = vpop.permute.xlu0 %951
        %v956 = vsel %vm573, %v914, 0
        %v959 = vsel %vm573, %v916, 0
        %961 = vmatpush.msra.mxu0 0.0
        %962 = vmatpush.msra.mxu0 0.0
        %963 = vmatpush.msra.mxu0 0.0
        %964 = vmatpush.msra.mxu0 0.0
        %965 = vmatpush.msra.mxu0 0.0
        %966 = vmatpush.msra.mxu0 0.0
        %967 = vmatpush.msra.mxu0 0.0
        %968 = vmatpush.msra.mxu0 0.0
        %969 = vmatpush.msra.mxu0 0.0
        %970 = vmatpush.msra.mxu0 0.0
        %971 = vmatpush.msra.mxu0 0.0
        %972 = vmatpush.msra.mxu0 0.0
        %973 = vmatpush.msra.mxu0 0.0
        %974 = vmatpush.msra.mxu0 0.0
        %975 = vmatpush.msra.mxu0 %v952
        %976 = vmatpush.msra.mxu0 %v950
        %977 = vmatmul.f32.gmra.mxu0 %v956
        %v978 = vpop.f32.mrf.mxu0
        %v979 = vadd.f32 0.0, %v978
        %980 = vmatmul.f32.gmra.mxu0 %v959
        %v981 = vpop.f32.mrf.mxu0
        %v982 = vadd.f32 0.0, %v981
        %983 = vdwg.mxu0
        %984 = vrot.lane.b32.xlu0 %v391, 88
        %v985 = vpop.permute.xlu0 %984
        %986 = vrot.lane.b32.xlu0 %v394, 88
        %v987 = vpop.permute.xlu0 %986
        %v991 = vsel %vm573, %v918, 0
        %v994 = vsel %vm573, %v920, 0
        %996 = vmatpush.msra.mxu0 0.0
        %997 = vmatpush.msra.mxu0 0.0
        %998 = vmatpush.msra.mxu0 0.0
        %999 = vmatpush.msra.mxu0 0.0
        %1000 = vmatpush.msra.mxu0 0.0
        %1001 = vmatpush.msra.mxu0 0.0
        %1002 = vmatpush.msra.mxu0 0.0
        %1003 = vmatpush.msra.mxu0 0.0
        %1004 = vmatpush.msra.mxu0 0.0
        %1005 = vmatpush.msra.mxu0 0.0
        %1006 = vmatpush.msra.mxu0 0.0
        %1007 = vmatpush.msra.mxu0 0.0
        %1008 = vmatpush.msra.mxu0 0.0
        %1009 = vmatpush.msra.mxu0 0.0
        %1010 = vmatpush.msra.mxu0 %v987
        %1011 = vmatpush.msra.mxu0 %v985
        %1012 = vmatmul.f32.gmra.mxu0 %v991
        %v1013 = vpop.f32.mrf.mxu0
        %v1014 = vadd.f32 0.0, %v1013
        %1015 = vmatmul.f32.gmra.mxu0 %v994
        %v1016 = vpop.f32.mrf.mxu0
        %v1017 = vadd.f32 0.0, %v1016
        %1018 = vdwg.mxu0
        %v1019 = vmul.f32 %v979, %v945
        %v1020 = vmul.f32 %v982, %v946
        %v1021 = vmul.f32 %v1014, %v947
        %v1022 = vmul.f32 %v1017, %v948
        %1024 = vrot.lane.b32.xlu0 %v220, 64
        %v1025 = vpop.permute.xlu0 %1024
        %v1028 = vsel %vm424, %v1019, 0
        %v1031 = vsel %vm424, %v1020, 0
        %v1034 = vsel %vm424, %v1021, 0
        %v1037 = vsel %vm424, %v1022, 0
        %1039 = vmatpush.msra.mxu0 0.0
        %1040 = vmatpush.msra.mxu0 0.0
        %1041 = vmatpush.msra.mxu0 0.0
        %1042 = vmatpush.msra.mxu0 0.0
        %1043 = vmatpush.msra.mxu0 0.0
        %1044 = vmatpush.msra.mxu0 0.0
        %1045 = vmatpush.msra.mxu0 0.0
        %1046 = vmatpush.msra.mxu0 0.0
        %1047 = vmatpush.msra.mxu0 0.0
        %1048 = vmatpush.msra.mxu0 0.0
        %1049 = vmatpush.msra.mxu0 0.0
        %1050 = vmatpush.msra.mxu0 0.0
        %1051 = vmatpush.msra.mxu0 0.0
        %1052 = vmatpush.msra.mxu0 0.0
        %1053 = vmatpush.msra.mxu0 0.0
        %1054 = vmatpush.msra.mxu0 %v1025
        %1055 = vmatmul.f32.gmra.mxu0 %v1028
        %v1056 = vpop.f32.mrf.mxu0
        %v1057 = vadd.f32 0.0, %v1056
        %1058 = vmatmul.f32.gmra.mxu0 %v1031
        %v1059 = vpop.f32.mrf.mxu0
        %v1060 = vadd.f32 0.0, %v1059
        %1061 = vmatmul.f32.gmra.mxu0 %v1034
        %v1062 = vpop.f32.mrf.mxu0
        %v1063 = vadd.f32 0.0, %v1062
        %1064 = vmatmul.f32.gmra.mxu0 %v1037
        %v1065 = vpop.f32.mrf.mxu0
        %v1066 = vadd.f32 0.0, %v1065
        %1067 = vdwg.mxu0
        %v1068 = vadd.f32 %v745, %v1057
        %v1069 = vadd.f32 %v746, %v1060
        %v1070 = vadd.f32 %v747, %v1063
        %v1071 = vadd.f32 %v748, %v1066
        %1072 = vrot.lane.b32.xlu0 %v412, 112
        %v1073 = vpop.permute.xlu0 %1072
        %1074 = vrot.lane.b32.xlu0 %v413, 112
        %v1075 = vpop.permute.xlu0 %1074
        %1076 = vrot.lane.b32.xlu0 %v385, 112
        %v1077 = vpop.permute.xlu0 %1076
        %1078 = vrot.lane.b32.xlu0 %v388, 112
        %v1079 = vpop.permute.xlu0 %1078
        %v1080 = vsel %vm424, %v1073, 0
        %v1082 = vsel %vm424, %v1075, 0
        %v1084 = vsel %vm424, %v1077, 0
        %v1086 = vsel %vm424, %v1079, 0
        %1088 = vmatpush.xpose.msra.mxu0 0.0
        %1089 = vmatpush.xpose.msra.mxu0 0.0
        %1090 = vmatpush.xpose.msra.mxu0 0.0
        %1091 = vmatpush.xpose.msra.mxu0 0.0
        %1092 = vmatpush.xpose.msra.mxu0 0.0
        %1093 = vmatpush.xpose.msra.mxu0 0.0
        %1094 = vmatpush.xpose.msra.mxu0 0.0
        %1095 = vmatpush.xpose.msra.mxu0 0.0
        %1096 = vmatpush.xpose.msra.mxu0 0.0
        %1097 = vmatpush.xpose.msra.mxu0 0.0
        %1098 = vmatpush.xpose.msra.mxu0 0.0
        %1099 = vmatpush.xpose.msra.mxu0 0.0
        %1100 = vmatpush.xpose.msra.mxu0 0.0
        %1101 = vmatpush.xpose.msra.mxu0 0.0
        %1102 = vmatpush.xpose.msra.mxu0 %v1086
        %1103 = vmatpush.xpose.msra.mxu0 %v1084
        %1104 = vmatmul.f32.gmra.mxu0 %v1080
        %v1105 = vpop.f32.mrf.mxu0
        %v1106 = vadd.f32 0.0, %v1105
        %1107 = vmatmul.f32.gmra.mxu0 %v1082
        %v1108 = vpop.f32.mrf.mxu0
        %v1109 = vadd.f32 0.0, %v1108
        %1110 = vdwg.mxu0
        %1111 = vrot.lane.b32.xlu0 %v414, 112
        %v1112 = vpop.permute.xlu0 %1111
        %1113 = vrot.lane.b32.xlu0 %v415, 112
        %v1114 = vpop.permute.xlu0 %1113
        %1115 = vrot.lane.b32.xlu0 %v391, 112
        %v1116 = vpop.permute.xlu0 %1115
        %1117 = vrot.lane.b32.xlu0 %v394, 112
        %v1118 = vpop.permute.xlu0 %1117
        %v1119 = vsel %vm424, %v1112, 0
        %v1121 = vsel %vm424, %v1114, 0
        %v1123 = vsel %vm424, %v1116, 0
        %v1125 = vsel %vm424, %v1118, 0
        %1127 = vmatpush.xpose.msra.mxu0 0.0
        %1128 = vmatpush.xpose.msra.mxu0 0.0
        %1129 = vmatpush.xpose.msra.mxu0 0.0
        %1130 = vmatpush.xpose.msra.mxu0 0.0
        %1131 = vmatpush.xpose.msra.mxu0 0.0
        %1132 = vmatpush.xpose.msra.mxu0 0.0
        %1133 = vmatpush.xpose.msra.mxu0 0.0
        %1134 = vmatpush.xpose.msra.mxu0 0.0
        %1135 = vmatpush.xpose.msra.mxu0 0.0
        %1136 = vmatpush.xpose.msra.mxu0 0.0
        %1137 = vmatpush.xpose.msra.mxu0 0.0
        %1138 = vmatpush.xpose.msra.mxu0 0.0
        %1139 = vmatpush.xpose.msra.mxu0 0.0
        %1140 = vmatpush.xpose.msra.mxu0 0.0
        %1141 = vmatpush.xpose.msra.mxu0 %v1125
        %1142 = vmatpush.xpose.msra.mxu0 %v1123
        %1143 = vmatmul.f32.gmra.mxu0 %v1119
        %v1144 = vpop.f32.mrf.mxu0
        %v1145 = vadd.f32 0.0, %v1144
        %1146 = vmatmul.f32.gmra.mxu0 %v1121
        %v1147 = vpop.f32.mrf.mxu0
        %v1148 = vadd.f32 0.0, %v1147
        %1149 = vdwg.mxu0
        %1150 = vrot.lane.b32.xlu0 %v412, 80
        %v1151 = vpop.permute.xlu0 %1150
        %1152 = vrot.lane.b32.xlu0 %v413, 80
        %v1153 = vpop.permute.xlu0 %1152
        %v1154 = vsel %vm424, %v1151, 0
        %v1156 = vsel %vm424, %v1153, 0
        %1158 = vmatpush.xpose.msra.mxu0 0.0
        %1159 = vmatpush.xpose.msra.mxu0 0.0
        %1160 = vmatpush.xpose.msra.mxu0 0.0
        %1161 = vmatpush.xpose.msra.mxu0 0.0
        %1162 = vmatpush.xpose.msra.mxu0 0.0
        %1163 = vmatpush.xpose.msra.mxu0 0.0
        %1164 = vmatpush.xpose.msra.mxu0 0.0
        %1165 = vmatpush.xpose.msra.mxu0 0.0
        %1166 = vmatpush.xpose.msra.mxu0 0.0
        %1167 = vmatpush.xpose.msra.mxu0 0.0
        %1168 = vmatpush.xpose.msra.mxu0 0.0
        %1169 = vmatpush.xpose.msra.mxu0 0.0
        %1170 = vmatpush.xpose.msra.mxu0 0.0
        %1171 = vmatpush.xpose.msra.mxu0 0.0
        %1172 = vmatpush.xpose.msra.mxu0 %v1086
        %1173 = vmatpush.xpose.msra.mxu0 %v1084
        %1174 = vmatmul.f32.gmra.mxu0 %v1154
        %v1175 = vpop.f32.mrf.mxu0
        %v1176 = vadd.f32 0.0, %v1175
        %1177 = vmatmul.f32.gmra.mxu0 %v1156
        %v1178 = vpop.f32.mrf.mxu0
        %v1179 = vadd.f32 0.0, %v1178
        %1180 = vdwg.mxu0
        %1181 = vrot.lane.b32.xlu0 %v414, 80
        %v1182 = vpop.permute.xlu0 %1181
        %1183 = vrot.lane.b32.xlu0 %v415, 80
        %v1184 = vpop.permute.xlu0 %1183
        %v1185 = vsel %vm424, %v1182, 0
        %v1187 = vsel %vm424, %v1184, 0
        %1189 = vmatpush.xpose.msra.mxu0 0.0
        %1190 = vmatpush.xpose.msra.mxu0 0.0
        %1191 = vmatpush.xpose.msra.mxu0 0.0
        %1192 = vmatpush.xpose.msra.mxu0 0.0
        %1193 = vmatpush.xpose.msra.mxu0 0.0
        %1194 = vmatpush.xpose.msra.mxu0 0.0
        %1195 = vmatpush.xpose.msra.mxu0 0.0
        %1196 = vmatpush.xpose.msra.mxu0 0.0
        %1197 = vmatpush.xpose.msra.mxu0 0.0
        %1198 = vmatpush.xpose.msra.mxu0 0.0
        %1199 = vmatpush.xpose.msra.mxu0 0.0
        %1200 = vmatpush.xpose.msra.mxu0 0.0
        %1201 = vmatpush.xpose.msra.mxu0 0.0
        %1202 = vmatpush.xpose.msra.mxu0 0.0
        %1203 = vmatpush.xpose.msra.mxu0 %v1125
        %1204 = vmatpush.xpose.msra.mxu0 %v1123
        %1205 = vmatmul.f32.gmra.mxu0 %v1185
        %v1206 = vpop.f32.mrf.mxu0
        %v1207 = vadd.f32 0.0, %v1206
        %1208 = vmatmul.f32.gmra.mxu0 %v1187
        %v1209 = vpop.f32.mrf.mxu0
        %v1210 = vadd.f32 0.0, %v1209
        %1211 = vdwg.mxu0
        %v1212 = vsel %vm558, %v1106, %v1176
        %v1213 = vsel %vm558, %v1109, %v1179
        %v1214 = vsel %vm558, %v1145, %v1207
        %v1215 = vsel %vm558, %v1148, %v1210
        %v1216 = vadd.f32 %v1212, %v565
        %v1217 = vadd.f32 %v1213, %v565
        %v1218 = vadd.f32 %v1214, %v566
        %v1219 = vadd.f32 %v1215, %v566
        %v1220 = vsel %vm573, %v1216, -inf
        %1221 = vmax.xlane.f32.xlu0 %v1220
        %v1222 = vpop.xlane.xlu0 %1221
        %v1223 = vsel %vm573, %v1217, -inf
        %1224 = vmax.xlane.f32.xlu0 %v1223
        %v1225 = vpop.xlane.xlu0 %1224
        %v1226 = vsel %vm573, %v1218, -inf
        %1227 = vmax.xlane.f32.xlu0 %v1226
        %v1228 = vpop.xlane.xlu0 %1227
        %v1229 = vsel %vm573, %v1219, -inf
        %1230 = vmax.xlane.f32.xlu0 %v1229
        %v1231 = vpop.xlane.xlu0 %1230
        %v1232 = vsub.f32 %v1216, %v1222
        %v1233 = vsub.f32 %v1217, %v1225
        %v1234 = vsub.f32 %v1218, %v1228
        %v1235 = vsub.f32 %v1219, %v1231
        %v1236 = vmul.f32 %v1232, 1.442695
        %v1237 = vpow.pop %v1236
        %v1238 = vmul.f32 %v1233, 1.442695
        %v1239 = vpow.pop %v1238
        %v1240 = vmul.f32 %v1234, 1.442695
        %v1241 = vpow.pop %v1240
        %v1242 = vmul.f32 %v1235, 1.442695
        %v1243 = vpow.pop %v1242
        %v1244 = vsel %vm573, %v1237, 0.0
        %1245 = vadd.xlane.f32.xlu0 %v1244
        %v1246 = vpop.xlane.xlu0 %1245
        %v1247 = vsel %vm573, %v1239, 0.0
        %1248 = vadd.xlane.f32.xlu0 %v1247
        %v1249 = vpop.xlane.xlu0 %1248
        %v1250 = vsel %vm573, %v1241, 0.0
        %1251 = vadd.xlane.f32.xlu0 %v1250
        %v1252 = vpop.xlane.xlu0 %1251
        %v1253 = vsel %vm573, %v1243, 0.0
        %1254 = vadd.xlane.f32.xlu0 %v1253
        %v1255 = vpop.xlane.xlu0 %1254
        %v1256 = vrcp.pop %v1246
        %v1257 = vrcp.pop %v1249
        %v1258 = vrcp.pop %v1252
        %v1259 = vrcp.pop %v1255
        %v1260 = vmul.f32 %v1246, %v1256
        %v1261 = vmul.f32 %v1249, %v1257
        %v1262 = vmul.f32 %v1252, %v1258
        %v1263 = vmul.f32 %v1255, %v1259
        %v1264 = vsub.f32 2.0, %v1260
        %v1265 = vsub.f32 2.0, %v1261
        %v1266 = vsub.f32 2.0, %v1262
        %v1267 = vsub.f32 2.0, %v1263
        %v1268 = vmul.f32 %v1256, %v1264
        %v1269 = vmul.f32 %v1257, %v1265
        %v1270 = vmul.f32 %v1258, %v1266
        %v1271 = vmul.f32 %v1259, %v1267
        %1272 = vrot.lane.b32.xlu0 %v385, 80
        %v1273 = vpop.permute.xlu0 %1272
        %1274 = vrot.lane.b32.xlu0 %v388, 80
        %v1275 = vpop.permute.xlu0 %1274
        %v1279 = vsel %vm573, %v1237, 0
        %v1282 = vsel %vm573, %v1239, 0
        %1284 = vmatpush.msra.mxu0 0.0
        %1285 = vmatpush.msra.mxu0 0.0
        %1286 = vmatpush.msra.mxu0 0.0
        %1287 = vmatpush.msra.mxu0 0.0
        %1288 = vmatpush.msra.mxu0 0.0
        %1289 = vmatpush.msra.mxu0 0.0
        %1290 = vmatpush.msra.mxu0 0.0
        %1291 = vmatpush.msra.mxu0 0.0
        %1292 = vmatpush.msra.mxu0 0.0
        %1293 = vmatpush.msra.mxu0 0.0
        %1294 = vmatpush.msra.mxu0 0.0
        %1295 = vmatpush.msra.mxu0 0.0
        %1296 = vmatpush.msra.mxu0 0.0
        %1297 = vmatpush.msra.mxu0 0.0
        %1298 = vmatpush.msra.mxu0 %v1275
        %1299 = vmatpush.msra.mxu0 %v1273
        %1300 = vmatmul.f32.gmra.mxu0 %v1279
        %v1301 = vpop.f32.mrf.mxu0
        %v1302 = vadd.f32 0.0, %v1301
        %1303 = vmatmul.f32.gmra.mxu0 %v1282
        %v1304 = vpop.f32.mrf.mxu0
        %v1305 = vadd.f32 0.0, %v1304
        %1306 = vdwg.mxu0
        %1307 = vrot.lane.b32.xlu0 %v391, 80
        %v1308 = vpop.permute.xlu0 %1307
        %1309 = vrot.lane.b32.xlu0 %v394, 80
        %v1310 = vpop.permute.xlu0 %1309
        %v1314 = vsel %vm573, %v1241, 0
        %v1317 = vsel %vm573, %v1243, 0
        %1319 = vmatpush.msra.mxu0 0.0
        %1320 = vmatpush.msra.mxu0 0.0
        %1321 = vmatpush.msra.mxu0 0.0
        %1322 = vmatpush.msra.mxu0 0.0
        %1323 = vmatpush.msra.mxu0 0.0
        %1324 = vmatpush.msra.mxu0 0.0
        %1325 = vmatpush.msra.mxu0 0.0
        %1326 = vmatpush.msra.mxu0 0.0
        %1327 = vmatpush.msra.mxu0 0.0
        %1328 = vmatpush.msra.mxu0 0.0
        %1329 = vmatpush.msra.mxu0 0.0
        %1330 = vmatpush.msra.mxu0 0.0
        %1331 = vmatpush.msra.mxu0 0.0
        %1332 = vmatpush.msra.mxu0 0.0
        %1333 = vmatpush.msra.mxu0 %v1310
        %1334 = vmatpush.msra.mxu0 %v1308
        %1335 = vmatmul.f32.gmra.mxu0 %v1314
        %v1336 = vpop.f32.mrf.mxu0
        %v1337 = vadd.f32 0.0, %v1336
        %1338 = vmatmul.f32.gmra.mxu0 %v1317
        %v1339 = vpop.f32.mrf.mxu0
        %v1340 = vadd.f32 0.0, %v1339
        %1341 = vdwg.mxu0
        %v1342 = vmul.f32 %v1302, %v1268
        %v1343 = vmul.f32 %v1305, %v1269
        %v1344 = vmul.f32 %v1337, %v1270
        %v1345 = vmul.f32 %v1340, %v1271
        %1347 = vrot.lane.b32.xlu0 %v222, 64
        %v1348 = vpop.permute.xlu0 %1347
        %v1351 = vsel %vm424, %v1342, 0
        %v1354 = vsel %vm424, %v1343, 0
        %v1357 = vsel %vm424, %v1344, 0
        %v1360 = vsel %vm424, %v1345, 0
        %1362 = vmatpush.msra.mxu0 0.0
        %1363 = vmatpush.msra.mxu0 0.0
        %1364 = vmatpush.msra.mxu0 0.0
        %1365 = vmatpush.msra.mxu0 0.0
        %1366 = vmatpush.msra.mxu0 0.0
        %1367 = vmatpush.msra.mxu0 0.0
        %1368 = vmatpush.msra.mxu0 0.0
        %1369 = vmatpush.msra.mxu0 0.0
        %1370 = vmatpush.msra.mxu0 0.0
        %1371 = vmatpush.msra.mxu0 0.0
        %1372 = vmatpush.msra.mxu0 0.0
        %1373 = vmatpush.msra.mxu0 0.0
        %1374 = vmatpush.msra.mxu0 0.0
        %1375 = vmatpush.msra.mxu0 0.0
        %1376 = vmatpush.msra.mxu0 0.0
        %1377 = vmatpush.msra.mxu0 %v1348
        %1378 = vmatmul.f32.gmra.mxu0 %v1351
        %v1379 = vpop.f32.mrf.mxu0
        %v1380 = vadd.f32 0.0, %v1379
        %1381 = vmatmul.f32.gmra.mxu0 %v1354
        %v1382 = vpop.f32.mrf.mxu0
        %v1383 = vadd.f32 0.0, %v1382
        %1384 = vmatmul.f32.gmra.mxu0 %v1357
        %v1385 = vpop.f32.mrf.mxu0
        %v1386 = vadd.f32 0.0, %v1385
        %1387 = vmatmul.f32.gmra.mxu0 %v1360
        %v1388 = vpop.f32.mrf.mxu0
        %v1389 = vadd.f32 0.0, %v1388
        %1390 = vdwg.mxu0
        %v1391 = vadd.f32 %v1068, %v1380
        %v1392 = vadd.f32 %v1069, %v1383
        %v1393 = vadd.f32 %v1070, %v1386
        %v1394 = vadd.f32 %v1071, %v1389
        %1395 = vrot.lane.b32.xlu0 %v412, 104
        %v1396 = vpop.permute.xlu0 %1395
        %1397 = vrot.lane.b32.xlu0 %v413, 104
        %v1398 = vpop.permute.xlu0 %1397
        %1399 = vrot.lane.b32.xlu0 %v385, 104
        %v1400 = vpop.permute.xlu0 %1399
        %1401 = vrot.lane.b32.xlu0 %v388, 104
        %v1402 = vpop.permute.xlu0 %1401
        %v1403 = vsel %vm424, %v1396, 0
        %v1405 = vsel %vm424, %v1398, 0
        %v1407 = vsel %vm424, %v1400, 0
        %v1409 = vsel %vm424, %v1402, 0
        %1411 = vmatpush.xpose.msra.mxu0 0.0
        %1412 = vmatpush.xpose.msra.mxu0 0.0
        %1413 = vmatpush.xpose.msra.mxu0 0.0
        %1414 = vmatpush.xpose.msra.mxu0 0.0
        %1415 = vmatpush.xpose.msra.mxu0 0.0
        %1416 = vmatpush.xpose.msra.mxu0 0.0
        %1417 = vmatpush.xpose.msra.mxu0 0.0
        %1418 = vmatpush.xpose.msra.mxu0 0.0
        %1419 = vmatpush.xpose.msra.mxu0 0.0
        %1420 = vmatpush.xpose.msra.mxu0 0.0
        %1421 = vmatpush.xpose.msra.mxu0 0.0
        %1422 = vmatpush.xpose.msra.mxu0 0.0
        %1423 = vmatpush.xpose.msra.mxu0 0.0
        %1424 = vmatpush.xpose.msra.mxu0 0.0
        %1425 = vmatpush.xpose.msra.mxu0 %v1409
        %1426 = vmatpush.xpose.msra.mxu0 %v1407
        %1427 = vmatmul.f32.gmra.mxu0 %v1403
        %v1428 = vpop.f32.mrf.mxu0
        %v1429 = vadd.f32 0.0, %v1428
        %1430 = vmatmul.f32.gmra.mxu0 %v1405
        %v1431 = vpop.f32.mrf.mxu0
        %v1432 = vadd.f32 0.0, %v1431
        %1433 = vdwg.mxu0
        %1434 = vrot.lane.b32.xlu0 %v414, 104
        %v1435 = vpop.permute.xlu0 %1434
        %1436 = vrot.lane.b32.xlu0 %v415, 104
        %v1437 = vpop.permute.xlu0 %1436
        %1438 = vrot.lane.b32.xlu0 %v391, 104
        %v1439 = vpop.permute.xlu0 %1438
        %1440 = vrot.lane.b32.xlu0 %v394, 104
        %v1441 = vpop.permute.xlu0 %1440
        %v1442 = vsel %vm424, %v1435, 0
        %v1444 = vsel %vm424, %v1437, 0
        %v1446 = vsel %vm424, %v1439, 0
        %v1448 = vsel %vm424, %v1441, 0
        %1450 = vmatpush.xpose.msra.mxu0 0.0
        %1451 = vmatpush.xpose.msra.mxu0 0.0
        %1452 = vmatpush.xpose.msra.mxu0 0.0
        %1453 = vmatpush.xpose.msra.mxu0 0.0
        %1454 = vmatpush.xpose.msra.mxu0 0.0
        %1455 = vmatpush.xpose.msra.mxu0 0.0
        %1456 = vmatpush.xpose.msra.mxu0 0.0
        %1457 = vmatpush.xpose.msra.mxu0 0.0
        %1458 = vmatpush.xpose.msra.mxu0 0.0
        %1459 = vmatpush.xpose.msra.mxu0 0.0
        %1460 = vmatpush.xpose.msra.mxu0 0.0
        %1461 = vmatpush.xpose.msra.mxu0 0.0
        %1462 = vmatpush.xpose.msra.mxu0 0.0
        %1463 = vmatpush.xpose.msra.mxu0 0.0
        %1464 = vmatpush.xpose.msra.mxu0 %v1448
        %1465 = vmatpush.xpose.msra.mxu0 %v1446
        %1466 = vmatmul.f32.gmra.mxu0 %v1442
        %v1467 = vpop.f32.mrf.mxu0
        %v1468 = vadd.f32 0.0, %v1467
        %1469 = vmatmul.f32.gmra.mxu0 %v1444
        %v1470 = vpop.f32.mrf.mxu0
        %v1471 = vadd.f32 0.0, %v1470
        %1472 = vdwg.mxu0
        %1473 = vrot.lane.b32.xlu0 %v412, 72
        %v1474 = vpop.permute.xlu0 %1473
        %1475 = vrot.lane.b32.xlu0 %v413, 72
        %v1476 = vpop.permute.xlu0 %1475
        %v1477 = vsel %vm424, %v1474, 0
        %v1479 = vsel %vm424, %v1476, 0
        %1481 = vmatpush.xpose.msra.mxu0 0.0
        %1482 = vmatpush.xpose.msra.mxu0 0.0
        %1483 = vmatpush.xpose.msra.mxu0 0.0
        %1484 = vmatpush.xpose.msra.mxu0 0.0
        %1485 = vmatpush.xpose.msra.mxu0 0.0
        %1486 = vmatpush.xpose.msra.mxu0 0.0
        %1487 = vmatpush.xpose.msra.mxu0 0.0
        %1488 = vmatpush.xpose.msra.mxu0 0.0
        %1489 = vmatpush.xpose.msra.mxu0 0.0
        %1490 = vmatpush.xpose.msra.mxu0 0.0
        %1491 = vmatpush.xpose.msra.mxu0 0.0
        %1492 = vmatpush.xpose.msra.mxu0 0.0
        %1493 = vmatpush.xpose.msra.mxu0 0.0
        %1494 = vmatpush.xpose.msra.mxu0 0.0
        %1495 = vmatpush.xpose.msra.mxu0 %v1409
        %1496 = vmatpush.xpose.msra.mxu0 %v1407
        %1497 = vmatmul.f32.gmra.mxu0 %v1477
        %v1498 = vpop.f32.mrf.mxu0
        %v1499 = vadd.f32 0.0, %v1498
        %1500 = vmatmul.f32.gmra.mxu0 %v1479
        %v1501 = vpop.f32.mrf.mxu0
        %v1502 = vadd.f32 0.0, %v1501
        %1503 = vdwg.mxu0
        %1504 = vrot.lane.b32.xlu0 %v414, 72
        %v1505 = vpop.permute.xlu0 %1504
        %1506 = vrot.lane.b32.xlu0 %v415, 72
        %v1507 = vpop.permute.xlu0 %1506
        %v1508 = vsel %vm424, %v1505, 0
        %v1510 = vsel %vm424, %v1507, 0
        %1512 = vmatpush.xpose.msra.mxu0 0.0
        %1513 = vmatpush.xpose.msra.mxu0 0.0
        %1514 = vmatpush.xpose.msra.mxu0 0.0
        %1515 = vmatpush.xpose.msra.mxu0 0.0
        %1516 = vmatpush.xpose.msra.mxu0 0.0
        %1517 = vmatpush.xpose.msra.mxu0 0.0
        %1518 = vmatpush.xpose.msra.mxu0 0.0
        %1519 = vmatpush.xpose.msra.mxu0 0.0
        %1520 = vmatpush.xpose.msra.mxu0 0.0
        %1521 = vmatpush.xpose.msra.mxu0 0.0
        %1522 = vmatpush.xpose.msra.mxu0 0.0
        %1523 = vmatpush.xpose.msra.mxu0 0.0
        %1524 = vmatpush.xpose.msra.mxu0 0.0
        %1525 = vmatpush.xpose.msra.mxu0 0.0
        %1526 = vmatpush.xpose.msra.mxu0 %v1448
        %1527 = vmatpush.xpose.msra.mxu0 %v1446
        %1528 = vmatmul.f32.gmra.mxu0 %v1508
        %v1529 = vpop.f32.mrf.mxu0
        %v1530 = vadd.f32 0.0, %v1529
        %1531 = vmatmul.f32.gmra.mxu0 %v1510
        %v1532 = vpop.f32.mrf.mxu0
        %v1533 = vadd.f32 0.0, %v1532
        %1534 = vdwg.mxu0
        %v1535 = vsel %vm558, %v1429, %v1499
        %v1536 = vsel %vm558, %v1432, %v1502
        %v1537 = vsel %vm558, %v1468, %v1530
        %v1538 = vsel %vm558, %v1471, %v1533
        %v1539 = vadd.f32 %v1535, %v565
        %v1540 = vadd.f32 %v1536, %v565
        %v1541 = vadd.f32 %v1537, %v566
        %v1542 = vadd.f32 %v1538, %v566
        %v1543 = vsel %vm573, %v1539, -inf
        %1544 = vmax.xlane.f32.xlu0 %v1543
        %v1545 = vpop.xlane.xlu0 %1544
        %v1546 = vsel %vm573, %v1540, -inf
        %1547 = vmax.xlane.f32.xlu0 %v1546
        %v1548 = vpop.xlane.xlu0 %1547
        %v1549 = vsel %vm573, %v1541, -inf
        %1550 = vmax.xlane.f32.xlu0 %v1549
        %v1551 = vpop.xlane.xlu0 %1550
        %v1552 = vsel %vm573, %v1542, -inf
        %1553 = vmax.xlane.f32.xlu0 %v1552
        %v1554 = vpop.xlane.xlu0 %1553
        %v1555 = vsub.f32 %v1539, %v1545
        %v1556 = vsub.f32 %v1540, %v1548
        %v1557 = vsub.f32 %v1541, %v1551
        %v1558 = vsub.f32 %v1542, %v1554
        %v1559 = vmul.f32 %v1555, 1.442695
        %v1560 = vpow.pop %v1559
        %v1561 = vmul.f32 %v1556, 1.442695
        %v1562 = vpow.pop %v1561
        %v1563 = vmul.f32 %v1557, 1.442695
        %v1564 = vpow.pop %v1563
        %v1565 = vmul.f32 %v1558, 1.442695
        %v1566 = vpow.pop %v1565
        %v1567 = vsel %vm573, %v1560, 0.0
        %1568 = vadd.xlane.f32.xlu0 %v1567
        %v1569 = vpop.xlane.xlu0 %1568
        %v1570 = vsel %vm573, %v1562, 0.0
        %1571 = vadd.xlane.f32.xlu0 %v1570
        %v1572 = vpop.xlane.xlu0 %1571
        %v1573 = vsel %vm573, %v1564, 0.0
        %1574 = vadd.xlane.f32.xlu0 %v1573
        %v1575 = vpop.xlane.xlu0 %1574
        %v1576 = vsel %vm573, %v1566, 0.0
        %1577 = vadd.xlane.f32.xlu0 %v1576
        %v1578 = vpop.xlane.xlu0 %1577
        %v1579 = vrcp.pop %v1569
        %v1580 = vrcp.pop %v1572
        %v1581 = vrcp.pop %v1575
        %v1582 = vrcp.pop %v1578
        %v1583 = vmul.f32 %v1569, %v1579
        %v1584 = vmul.f32 %v1572, %v1580
        %v1585 = vmul.f32 %v1575, %v1581
        %v1586 = vmul.f32 %v1578, %v1582
        %v1587 = vsub.f32 2.0, %v1583
        %v1588 = vsub.f32 2.0, %v1584
        %v1589 = vsub.f32 2.0, %v1585
        %v1590 = vsub.f32 2.0, %v1586
        %v1591 = vmul.f32 %v1579, %v1587
        %v1592 = vmul.f32 %v1580, %v1588
        %v1593 = vmul.f32 %v1581, %v1589
        %v1594 = vmul.f32 %v1582, %v1590
        %1595 = vrot.lane.b32.xlu0 %v385, 72
        %v1596 = vpop.permute.xlu0 %1595
        %1597 = vrot.lane.b32.xlu0 %v388, 72
        %v1598 = vpop.permute.xlu0 %1597
        %v1602 = vsel %vm573, %v1560, 0
        %v1605 = vsel %vm573, %v1562, 0
        %1607 = vmatpush.msra.mxu0 0.0
        %1608 = vmatpush.msra.mxu0 0.0
        %1609 = vmatpush.msra.mxu0 0.0
        %1610 = vmatpush.msra.mxu0 0.0
        %1611 = vmatpush.msra.mxu0 0.0
        %1612 = vmatpush.msra.mxu0 0.0
        %1613 = vmatpush.msra.mxu0 0.0
        %1614 = vmatpush.msra.mxu0 0.0
        %1615 = vmatpush.msra.mxu0 0.0
        %1616 = vmatpush.msra.mxu0 0.0
        %1617 = vmatpush.msra.mxu0 0.0
        %1618 = vmatpush.msra.mxu0 0.0
        %1619 = vmatpush.msra.mxu0 0.0
        %1620 = vmatpush.msra.mxu0 0.0
        %1621 = vmatpush.msra.mxu0 %v1598
        %1622 = vmatpush.msra.mxu0 %v1596
        %1623 = vmatmul.f32.gmra.mxu0 %v1602
        %v1624 = vpop.f32.mrf.mxu0
        %v1625 = vadd.f32 0.0, %v1624
        %1626 = vmatmul.f32.gmra.mxu0 %v1605
        %v1627 = vpop.f32.mrf.mxu0
        %v1628 = vadd.f32 0.0, %v1627
        %1629 = vdwg.mxu0
        %1630 = vrot.lane.b32.xlu0 %v391, 72
        %v1631 = vpop.permute.xlu0 %1630
        %1632 = vrot.lane.b32.xlu0 %v394, 72
        %v1633 = vpop.permute.xlu0 %1632
        %v1637 = vsel %vm573, %v1564, 0
        %v1640 = vsel %vm573, %v1566, 0
        %1642 = vmatpush.msra.mxu0 0.0
        %1643 = vmatpush.msra.mxu0 0.0
        %1644 = vmatpush.msra.mxu0 0.0
        %1645 = vmatpush.msra.mxu0 0.0
        %1646 = vmatpush.msra.mxu0 0.0
        %1647 = vmatpush.msra.mxu0 0.0
        %1648 = vmatpush.msra.mxu0 0.0
        %1649 = vmatpush.msra.mxu0 0.0
        %1650 = vmatpush.msra.mxu0 0.0
        %1651 = vmatpush.msra.mxu0 0.0
        %1652 = vmatpush.msra.mxu0 0.0
        %1653 = vmatpush.msra.mxu0 0.0
        %1654 = vmatpush.msra.mxu0 0.0
        %1655 = vmatpush.msra.mxu0 0.0
        %1656 = vmatpush.msra.mxu0 %v1633
        %1657 = vmatpush.msra.mxu0 %v1631
        %1658 = vmatmul.f32.gmra.mxu0 %v1637
        %v1659 = vpop.f32.mrf.mxu0
        %v1660 = vadd.f32 0.0, %v1659
        %1661 = vmatmul.f32.gmra.mxu0 %v1640
        %v1662 = vpop.f32.mrf.mxu0
        %v1663 = vadd.f32 0.0, %v1662
        %1664 = vdwg.mxu0
        %v1665 = vmul.f32 %v1625, %v1591
        %v1666 = vmul.f32 %v1628, %v1592
        %v1667 = vmul.f32 %v1660, %v1593
        %v1668 = vmul.f32 %v1663, %v1594
        %1670 = vrot.lane.b32.xlu0 %v224, 64
        %v1671 = vpop.permute.xlu0 %1670
        %v1674 = vsel %vm424, %v1665, 0
        %v1677 = vsel %vm424, %v1666, 0
        %v1680 = vsel %vm424, %v1667, 0
        %v1683 = vsel %vm424, %v1668, 0
        %1685 = vmatpush.msra.mxu0 0.0
        %1686 = vmatpush.msra.mxu0 0.0
        %1687 = vmatpush.msra.mxu0 0.0
        %1688 = vmatpush.msra.mxu0 0.0
        %1689 = vmatpush.msra.mxu0 0.0
        %1690 = vmatpush.msra.mxu0 0.0
        %1691 = vmatpush.msra.mxu0 0.0
        %1692 = vmatpush.msra.mxu0 0.0
        %1693 = vmatpush.msra.mxu0 0.0
        %1694 = vmatpush.msra.mxu0 0.0
        %1695 = vmatpush.msra.mxu0 0.0
        %1696 = vmatpush.msra.mxu0 0.0
        %1697 = vmatpush.msra.mxu0 0.0
        %1698 = vmatpush.msra.mxu0 0.0
        %1699 = vmatpush.msra.mxu0 0.0
        %1700 = vmatpush.msra.mxu0 %v1671
        %1701 = vmatmul.f32.gmra.mxu0 %v1674
        %v1702 = vpop.f32.mrf.mxu0
        %v1703 = vadd.f32 0.0, %v1702
        %1704 = vmatmul.f32.gmra.mxu0 %v1677
        %v1705 = vpop.f32.mrf.mxu0
        %v1706 = vadd.f32 0.0, %v1705
        %1707 = vmatmul.f32.gmra.mxu0 %v1680
        %v1708 = vpop.f32.mrf.mxu0
        %v1709 = vadd.f32 0.0, %v1708
        %1710 = vmatmul.f32.gmra.mxu0 %v1683
        %v1711 = vpop.f32.mrf.mxu0
        %v1712 = vadd.f32 0.0, %v1711
        %1713 = vdwg.mxu0
        %v1714 = vadd.f32 %v1391, %v1703
        %v1715 = vadd.f32 %v1392, %v1706
        %v1716 = vadd.f32 %v1393, %v1709
        %v1717 = vadd.f32 %v1394, %v1712
        %v1718 = vsel %vm325, %v1714, 0.0
        %1719 = vadd.xlane.f32.xlu0 %v1718
        %v1720 = vpop.xlane.xlu0 %1719
        %v1721 = vsel %vm325, %v1715, 0.0
        %1722 = vadd.xlane.f32.xlu0 %v1721
        %v1723 = vpop.xlane.xlu0 %1722
        %v1724 = vsel %vm325, %v1716, 0.0
        %1725 = vadd.xlane.f32.xlu0 %v1724
        %v1726 = vpop.xlane.xlu0 %1725
        %v1727 = vsel %vm325, %v1717, 0.0
        %1728 = vadd.xlane.f32.xlu0 %v1727
        %v1729 = vpop.xlane.xlu0 %1728
        %v1730 = vrcp.pop 32.0
        %v1731 = vmul.f32 32.0, %v1730
        %v1732 = vsub.f32 1.0, %v1731
        %v1733 = vmul.f32 %v1730, %v1732
        %v1734 = vadd.f32 %v1730, %v1733
        %vm1735 = vweird.f32 %v1730
        %v1736 = vsel %vm1735, %v1730, %v1734
        %v1737 = vmul.f32 %v1720, %v1736
        %v1738 = vmul.f32 %v1723, %v1736
        %v1739 = vmul.f32 %v1726, %v1736
        %v1740 = vmul.f32 %v1729, %v1736
        %v1741 = vsub.f32 %v1714, %v1737
        %v1742 = vsub.f32 %v1715, %v1738
        %v1743 = vsub.f32 %v1716, %v1739
        %v1744 = vsub.f32 %v1717, %v1740
        %v1745 = vmul.f32 %v1741, %v1741
        %v1746 = vmul.f32 %v1742, %v1742
        %v1747 = vmul.f32 %v1743, %v1743
        %v1748 = vmul.f32 %v1744, %v1744
        %v1749 = vsel %vm325, %v1745, 0.0
        %1750 = vadd.xlane.f32.xlu0 %v1749
        %v1751 = vpop.xlane.xlu0 %1750
        %v1752 = vsel %vm325, %v1746, 0.0
        %1753 = vadd.xlane.f32.xlu0 %v1752
        %v1754 = vpop.xlane.xlu0 %1753
        %v1755 = vsel %vm325, %v1747, 0.0
        %1756 = vadd.xlane.f32.xlu0 %v1755
        %v1757 = vpop.xlane.xlu0 %1756
        %v1758 = vsel %vm325, %v1748, 0.0
        %1759 = vadd.xlane.f32.xlu0 %v1758
        %v1760 = vpop.xlane.xlu0 %1759
        %v1761 = vmul.f32 %v1751, %v1736
        %v1762 = vmul.f32 %v1754, %v1736
        %v1763 = vmul.f32 %v1757, %v1736
        %v1764 = vmul.f32 %v1760, %v1736
        %v1765 = vadd.f32 %v1761, 1e-12
        %v1766 = vadd.f32 %v1762, 1e-12
        %v1767 = vadd.f32 %v1763, 1e-12
        %v1768 = vadd.f32 %v1764, 1e-12
        %v1769 = vrsqrt.pop %v1765
        %v1770 = vmul.f32 %v1769, %v1765
        %v1771 = vmul.f32 %v1770, %v1769
        %v1772 = vmul.f32 0.5, %v1771
        %v1773 = vsub.f32 1.5, %v1772
        %v1774 = vmul.f32 %v1769, %v1773
        %vm1775 = vweird.f32 %v1765
        %vm1776 = vweird.f32 %v1769
        %vm1777 = vmor %vm1775, %vm1776
        %v1778 = vsel %vm1777, %v1769, %v1774
        %v1779 = vrsqrt.pop %v1766
        %v1780 = vmul.f32 %v1779, %v1766
        %v1781 = vmul.f32 %v1780, %v1779
        %v1782 = vmul.f32 0.5, %v1781
        %v1783 = vsub.f32 1.5, %v1782
        %v1784 = vmul.f32 %v1779, %v1783
        %vm1785 = vweird.f32 %v1766
        %vm1786 = vweird.f32 %v1779
        %vm1787 = vmor %vm1785, %vm1786
        %v1788 = vsel %vm1787, %v1779, %v1784
        %v1789 = vrsqrt.pop %v1767
        %v1790 = vmul.f32 %v1789, %v1767
        %v1791 = vmul.f32 %v1790, %v1789
        %v1792 = vmul.f32 0.5, %v1791
        %v1793 = vsub.f32 1.5, %v1792
        %v1794 = vmul.f32 %v1789, %v1793
        %vm1795 = vweird.f32 %v1767
        %vm1796 = vweird.f32 %v1789
        %vm1797 = vmor %vm1795, %vm1796
        %v1798 = vsel %vm1797, %v1789, %v1794
        %v1799 = vrsqrt.pop %v1768
        %v1800 = vmul.f32 %v1799, %v1768
        %v1801 = vmul.f32 %v1800, %v1799
        %v1802 = vmul.f32 0.5, %v1801
        %v1803 = vsub.f32 1.5, %v1802
        %v1804 = vmul.f32 %v1799, %v1803
        %vm1805 = vweird.f32 %v1768
        %vm1806 = vweird.f32 %v1799
        %vm1807 = vmor %vm1805, %vm1806
        %v1808 = vsel %vm1807, %v1799, %v1804
        %v1809 = vmul.f32 %v1741, %v1778
        %v1810 = vmul.f32 %v1742, %v1788
        %v1811 = vmul.f32 %v1743, %v1798
        %v1812 = vmul.f32 %v1744, %v1808
        %v1813 = vmul.f32 %v1809, %v234
        %v1814 = vmul.f32 %v1810, %v234
        %v1815 = vmul.f32 %v1811, %v234
        %v1816 = vmul.f32 %v1812, %v234
        %v1817 = vadd.f32 %v1813, %v235
        %v1818 = vadd.f32 %v1814, %v235
        %v1819 = vadd.f32 %v1815, %v235
        %v1820 = vadd.f32 %v1816, %v235
        %1825 = vrot.lane.b32.xlu0 %v218, 32
        %v1826 = vpop.permute.xlu0 %1825
        %1827 = vrot.lane.b32.xlu0 %v228, 32
        %v1828 = vpop.permute.xlu0 %1827
        %1829 = vrot.lane.b32.xlu0 %v220, 32
        %v1830 = vpop.permute.xlu0 %1829
        %1831 = vrot.lane.b32.xlu0 %v229, 32
        %v1832 = vpop.permute.xlu0 %1831
        %1833 = vrot.lane.b32.xlu0 %v222, 32
        %v1834 = vpop.permute.xlu0 %1833
        %1835 = vrot.lane.b32.xlu0 %v230, 32
        %v1836 = vpop.permute.xlu0 %1835
        %1837 = vrot.lane.b32.xlu0 %v224, 32
        %v1838 = vpop.permute.xlu0 %1837
        %1839 = vrot.lane.b32.xlu0 %v231, 32
        %v1840 = vpop.permute.xlu0 %1839
        %v1841 = vsel %vm325, %v1826, %v1828
        %v1842 = vsel %vm325, %v1830, %v1832
        %v1843 = vsel %vm325, %v1834, %v1836
        %v1844 = vsel %vm325, %v1838, %v1840
        %1850 = vrot.lane.b32.xlu0 %v227, 32
        %v1851 = vpop.permute.xlu0 %1850
        %1852 = vrot.lane.b32.xlu0 %v232, 32
        %v1853 = vpop.permute.xlu0 %1852
        %v1854 = vsel %vm325, %v1851, %v1853
        %v1857 = vsel %vm325, %v1817, 0
        %v1860 = vsel %vm325, %v1818, 0
        %v1863 = vsel %vm325, %v1819, 0
        %v1866 = vsel %vm325, %v1820, 0
        %1868 = vmatpush.msra.mxu0 0.0
        %1869 = vmatpush.msra.mxu0 0.0
        %1870 = vmatpush.msra.mxu0 0.0
        %1871 = vmatpush.msra.mxu0 0.0
        %1872 = vmatpush.msra.mxu0 0.0
        %1873 = vmatpush.msra.mxu0 0.0
        %1874 = vmatpush.msra.mxu0 0.0
        %1875 = vmatpush.msra.mxu0 0.0
        %1876 = vmatpush.msra.mxu0 0.0
        %1877 = vmatpush.msra.mxu0 0.0
        %1878 = vmatpush.msra.mxu0 0.0
        %1879 = vmatpush.msra.mxu0 0.0
        %1880 = vmatpush.msra.mxu0 %v1844
        %1881 = vmatpush.msra.mxu0 %v1843
        %1882 = vmatpush.msra.mxu0 %v1842
        %1883 = vmatpush.msra.mxu0 %v1841
        %1884 = vmatmul.f32.gmra.mxu0 %v1857
        %v1885 = vpop.f32.mrf.mxu0
        %v1886 = vadd.f32 %v1854, %v1885
        %1887 = vmatmul.f32.gmra.mxu0 %v1860
        %v1888 = vpop.f32.mrf.mxu0
        %v1889 = vadd.f32 %v1854, %v1888
        %1890 = vmatmul.f32.gmra.mxu0 %v1863
        %v1891 = vpop.f32.mrf.mxu0
        %v1892 = vadd.f32 %v1854, %v1891
        %1893 = vmatmul.f32.gmra.mxu0 %v1866
        %v1894 = vpop.f32.mrf.mxu0
        %v1895 = vadd.f32 %v1854, %v1894
        %1896 = vdwg.mxu0
        %v1897 = vmul.f32 %v1886, %v1886
        %v1898 = vmul.f32 %v1889, %v1889
        %v1899 = vmul.f32 %v1892, %v1892
        %v1900 = vmul.f32 %v1895, %v1895
        %v1901 = vmul.f32 %v1886, %v1897
        %v1902 = vmul.f32 %v1889, %v1898
        %v1903 = vmul.f32 %v1892, %v1899
        %v1904 = vmul.f32 %v1895, %v1900
        %v1905 = vmul.f32 %v1901, 0.044715
        %v1906 = vmul.f32 %v1902, 0.044715
        %v1907 = vmul.f32 %v1903, 0.044715
        %v1908 = vmul.f32 %v1904, 0.044715
        %v1909 = vadd.f32 %v1886, %v1905
        %v1910 = vadd.f32 %v1889, %v1906
        %v1911 = vadd.f32 %v1892, %v1907
        %v1912 = vadd.f32 %v1895, %v1908
        %v1913 = vmul.f32 %v1909, 0.7978846
        %v1914 = vmul.f32 %v1910, 0.7978846
        %v1915 = vmul.f32 %v1911, 0.7978846
        %v1916 = vmul.f32 %v1912, 0.7978846
        %v1917 = vtanh.pop %v1913
        %v1918 = vtanh.pop %v1914
        %v1919 = vtanh.pop %v1915
        %v1920 = vtanh.pop %v1916
        %v1921 = vadd.f32 %v1917, 1.0
        %v1922 = vadd.f32 %v1918, 1.0
        %v1923 = vadd.f32 %v1919, 1.0
        %v1924 = vadd.f32 %v1920, 1.0
        %v1925 = vmul.f32 %v1921, 0.5
        %v1926 = vmul.f32 %v1922, 0.5
        %v1927 = vmul.f32 %v1923, 0.5
        %v1928 = vmul.f32 %v1924, 0.5
        %v1929 = vmul.f32 %v1886, %v1925
        %v1930 = vmul.f32 %v1889, %v1926
        %v1931 = vmul.f32 %v1892, %v1927
        %v1932 = vmul.f32 %v1895, %v1928
        %1933 = vmatpush.msra.mxu0 %v253
        %1934 = vmatpush.msra.mxu0 %v252
        %1935 = vmatpush.msra.mxu0 %v251
        %1936 = vmatpush.msra.mxu0 %v250
        %1937 = vmatpush.msra.mxu0 %v249
        %1938 = vmatpush.msra.mxu0 %v248
        %1939 = vmatpush.msra.mxu0 %v247
        %1940 = vmatpush.msra.mxu0 %v246
        %1941 = vmatpush.msra.mxu0 %v245
        %1942 = vmatpush.msra.mxu0 %v244
        %1943 = vmatpush.msra.mxu0 %v243
        %1944 = vmatpush.msra.mxu0 %v242
        %1945 = vmatpush.msra.mxu0 %v241
        %1946 = vmatpush.msra.mxu0 %v240
        %1947 = vmatpush.msra.mxu0 %v239
        %1948 = vmatpush.msra.mxu0 %v238
        %1949 = vmatmul.f32.gmra.mxu0 %v1929
        %v1950 = vpop.f32.mrf.mxu0
        %v1951 = vadd.f32 %v233, %v1950
        %1952 = vmatmul.f32.gmra.mxu0 %v1930
        %v1953 = vpop.f32.mrf.mxu0
        %v1954 = vadd.f32 %v233, %v1953
        %1955 = vmatmul.f32.gmra.mxu0 %v1931
        %v1956 = vpop.f32.mrf.mxu0
        %v1957 = vadd.f32 %v233, %v1956
        %1958 = vmatmul.f32.gmra.mxu0 %v1932
        %v1959 = vpop.f32.mrf.mxu0
        %v1960 = vadd.f32 %v233, %v1959
        %1961 = vdwg.mxu0
        %v1962 = vadd.f32 %v1951, %v1817
        %v1963 = vadd.f32 %v1954, %v1818
        %v1964 = vadd.f32 %v1957, %v1819
        %v1965 = vadd.f32 %v1960, %v1820
        %v1966 = vsel %vm325, %v1962, 0.0
        %1967 = vadd.xlane.f32.xlu0 %v1966
        %v1968 = vpop.xlane.xlu0 %1967
        %v1969 = vsel %vm325, %v1963, 0.0
        %1970 = vadd.xlane.f32.xlu0 %v1969
        %v1971 = vpop.xlane.xlu0 %1970
        %v1972 = vsel %vm325, %v1964, 0.0
        %1973 = vadd.xlane.f32.xlu0 %v1972
        %v1974 = vpop.xlane.xlu0 %1973
        %v1975 = vsel %vm325, %v1965, 0.0
        %1976 = vadd.xlane.f32.xlu0 %v1975
        %v1977 = vpop.xlane.xlu0 %1976
        %v1978 = vmul.f32 %v1968, %v1736
        %v1979 = vmul.f32 %v1971, %v1736
        %v1980 = vmul.f32 %v1974, %v1736
        %v1981 = vmul.f32 %v1977, %v1736
        %v1982 = vsub.f32 %v1962, %v1978
        %v1983 = vsub.f32 %v1963, %v1979
        %v1984 = vsub.f32 %v1964, %v1980
        %v1985 = vsub.f32 %v1965, %v1981
        %v1986 = vmul.f32 %v1982, %v1982
        %v1987 = vmul.f32 %v1983, %v1983
        %v1988 = vmul.f32 %v1984, %v1984
        %v1989 = vmul.f32 %v1985, %v1985
        %v1990 = vsel %vm325, %v1986, 0.0
        %1991 = vadd.xlane.f32.xlu0 %v1990
        %v1992 = vpop.xlane.xlu0 %1991
        %v1993 = vsel %vm325, %v1987, 0.0
        %1994 = vadd.xlane.f32.xlu0 %v1993
        %v1995 = vpop.xlane.xlu0 %1994
        %v1996 = vsel %vm325, %v1988, 0.0
        %1997 = vadd.xlane.f32.xlu0 %v1996
        %v1998 = vpop.xlane.xlu0 %1997
        %v1999 = vsel %vm325, %v1989, 0.0
        %2000 = vadd.xlane.f32.xlu0 %v1999
        %v2001 = vpop.xlane.xlu0 %2000
        %v2002 = vmul.f32 %v1992, %v1736
        %v2003 = vmul.f32 %v1995, %v1736
        %v2004 = vmul.f32 %v1998, %v1736
        %v2005 = vmul.f32 %v2001, %v1736
        %v2006 = vadd.f32 %v2002, 1e-12
        %v2007 = vadd.f32 %v2003, 1e-12
        %v2008 = vadd.f32 %v2004, 1e-12
        %v2009 = vadd.f32 %v2005, 1e-12
        %v2010 = vrsqrt.pop %v2006
        %v2011 = vmul.f32 %v2010, %v2006
        %v2012 = vmul.f32 %v2011, %v2010
        %v2013 = vmul.f32 0.5, %v2012
        %v2014 = vsub.f32 1.5, %v2013
        %v2015 = vmul.f32 %v2010, %v2014
        %vm2016 = vweird.f32 %v2006
        %vm2017 = vweird.f32 %v2010
        %vm2018 = vmor %vm2016, %vm2017
        %v2019 = vsel %vm2018, %v2010, %v2015
        %v2020 = vrsqrt.pop %v2007
        %v2021 = vmul.f32 %v2020, %v2007
        %v2022 = vmul.f32 %v2021, %v2020
        %v2023 = vmul.f32 0.5, %v2022
        %v2024 = vsub.f32 1.5, %v2023
        %v2025 = vmul.f32 %v2020, %v2024
        %vm2026 = vweird.f32 %v2007
        %vm2027 = vweird.f32 %v2020
        %vm2028 = vmor %vm2026, %vm2027
        %v2029 = vsel %vm2028, %v2020, %v2025
        %v2030 = vrsqrt.pop %v2008
        %v2031 = vmul.f32 %v2030, %v2008
        %v2032 = vmul.f32 %v2031, %v2030
        %v2033 = vmul.f32 0.5, %v2032
        %v2034 = vsub.f32 1.5, %v2033
        %v2035 = vmul.f32 %v2030, %v2034
        %vm2036 = vweird.f32 %v2008
        %vm2037 = vweird.f32 %v2030
        %vm2038 = vmor %vm2036, %vm2037
        %v2039 = vsel %vm2038, %v2030, %v2035
        %v2040 = vrsqrt.pop %v2009
        %v2041 = vmul.f32 %v2040, %v2009
        %v2042 = vmul.f32 %v2041, %v2040
        %v2043 = vmul.f32 0.5, %v2042
        %v2044 = vsub.f32 1.5, %v2043
        %v2045 = vmul.f32 %v2040, %v2044
        %vm2046 = vweird.f32 %v2009
        %vm2047 = vweird.f32 %v2040
        %vm2048 = vmor %vm2046, %vm2047
        %v2049 = vsel %vm2048, %v2040, %v2045
        %v2050 = vmul.f32 %v1982, %v2019
        %v2051 = vmul.f32 %v1983, %v2029
        %v2052 = vmul.f32 %v1984, %v2039
        %v2053 = vmul.f32 %v1985, %v2049
        %v2054 = vmul.f32 %v2050, %v236
        %v2055 = vmul.f32 %v2051, %v236
        %v2056 = vmul.f32 %v2052, %v236
        %v2057 = vmul.f32 %v2053, %v236
        %v2058 = vadd.f32 %v2054, %v237
        %v2059 = vadd.f32 %v2055, %v237
        %v2060 = vadd.f32 %v2056, %v237
        %v2061 = vadd.f32 %v2057, %v237
        %2062 = vst.msk [vmem:[#allocation2] sm:$0xff] %vm325, %v2058
        %2063 = vst.msk [vmem:[#allocation2 + $0x8] sm:$0xff] %vm325, %v2059
        %2064 = vst.msk [vmem:[#allocation2 + $0x10] sm:$0xff] %vm325, %v2060
        %2065 = vst.msk [vmem:[#allocation2 + $0x18] sm:$0xff] %vm325, %v2061
        // Predicated region
        $region41: #{tpu_custom_call.1} parent=35 // pred_check
          %p2066 = pneg %p123
        $region42: #{tpu_custom_call.1} parent=35 // pred_check_branch
          %2068 = sbr.rel (%p2066) target = $region44
        $region43: #{tpu_custom_call.1} parent=35 // pred_region
          %2070 = vsyncadd [#allocation3], 0
          %s2071 = sshll.u32 [#allocation2], 4
          %s2072 = int_to_ptr.vmem [resolvable:$true] %s2071
          %s2073 = sshll.u32 %s4, 4
          %s2074 = int_to_ptr.hbm [resolvable:$true] %s2073
          %2079 = dma.vmem_to_hbm [thread:$0]  %s2072, 512, %s2074, [#allocation3], 128, 128, 8
        $region44: #{tpu_custom_call.1} parent=35 // pred_fallthru
          _
        // Predicated region
        $region45: #{tpu_custom_call.1} parent=35 // pred_check
          %p2080 = pneg %p123
        $region46: #{tpu_custom_call.1} parent=35 // pred_check_branch
          %2082 = sbr.rel (%p2080) target = $region48
        $region47: #{tpu_custom_call.1} parent=35 // pred_region
          %2084 = dma.done [#allocation3], 512
        $region48: #{tpu_custom_call.1} parent=35 // pred_fallthru
          _
      $region36: #{tpu_custom_call.1} parent=5 // pred_fallthru
        _
      %p2085 = scmp.le.s32.totalorder 2, %s11
      // Predicated region
      $region49: #{tpu_custom_call.1} parent=5 // pred_check
        %p2086 = pneg %p2085
      $region50: #{tpu_custom_call.1} parent=5 // pred_check_branch
        %2088 = sbr.rel (%p2086) target = $region52
      $region51: #{tpu_custom_call.1} parent=5 // pred_region
        %s2089 = ssub.s32 %s11, 2
      $region52: #{tpu_custom_call.1} parent=5 // pred_fallthru
        _
    $region6: #{tpu_custom_call.1} parent=1 // loop_footer
      %s15 = sadd.s32 1, %s11
    $region7: #{tpu_custom_call.1} parent=1 // loop_footer_branch
      %10 = sbr.rel target = $region3
    $region8: #{tpu_custom_call.1} parent=1 // loop_exit
      _
    %2090 = vsyncpa [#allocation3], 1
    %s2091 = scalar_lea.sflag [#allocation3], 1
    %2092 = vsyncpa %s2091, 1

</llo_original>
